<compile_context>
chip_gen: v5e
topology: v5e:2x2
jax: 0.10.0
libtpu: 0.0.40
codegen_flags: <defaults>
</compile_context>

<pallas_src>
import functools
import math

import jax
import jax.numpy as jnp
from jax import lax
from jax.experimental import pallas as pl
from jax.experimental.pallas import tpu as pltpu


def _eye(n, dtype):
    rows = lax.broadcasted_iota(jnp.int32, (n, n), 0)
    cols = lax.broadcasted_iota(jnp.int32, (n, n), 1)
    return (rows == cols).astype(dtype)


def _pick_tile(dim, target, granule):
    """Largest multiple of `granule` that divides `dim` and is <= target.

    Falls back to the full dimension (a full-extent block is always legal)."""
    if dim <= target:
        return dim
    t = (target // granule) * granule
    while t >= granule:
        if dim % t == 0:
            return t
        t -= granule
    return dim


def resolve_block(in_features, block):
    """Mirror the torch module's __init__ block-size adjustment."""
    if block > in_features:
        return in_features
    if in_features % block != 0:
        return math.gcd(block, in_features)
    return block


# ---------------------------------------------------------------------------
# Kernel A: streaming covariance + Newton-Schulz isqrt + weight whitening
# ---------------------------------------------------------------------------
def preprocess_kernel(x_ref, w_ref, b_ref,
                      mean_ref, deconv_ref, wt_ref, biasc_ref,
                      sum_acc, gram_acc,
                      *, eps, n_iter, m_total, rows_per_step):
    s = pl.program_id(0)
    block = x_ref.shape[1]
    nb, out_f, _ = w_ref.shape

    @pl.when(s == 0)
    def _():
        sum_acc[...] = jnp.zeros_like(sum_acc)
        gram_acc[...] = jnp.zeros_like(gram_acc)

    # ---- streamed accumulation of sum(x) and x^T x -------------------------
    x = x_ref[...].astype(jnp.float32)                          # (TR, block)
    row = s * rows_per_step + lax.broadcasted_iota(jnp.int32, x.shape, 0)
    x = jnp.where(row < m_total, x, 0.0)                        # mask tail padding
    sum_acc[...] += jnp.sum(x, axis=0, keepdims=True)
    gram_acc[...] += lax.dot_general(                           # x^T @ x
        x, x, (((0,), (0,)), ((), ())), preferred_element_type=jnp.float32)

    # ---- finalize everything on the last chunk ------------------------------
    @pl.when(s == pl.num_programs(0) - 1)
    def _():
        inv_m = 1.0 / float(m_total)
        mean = sum_acc[...] * inv_m                             # (1, block)
        eye = _eye(block, jnp.float32)

        # outer[a, b] = mean[a] * mean[b], built as diag(mean) @ rows(mean)
        # (avoids transposing the (1, block) row vector in-kernel).
        outer = jnp.dot(eye * mean, jnp.broadcast_to(mean, (block, block)),
                        preferred_element_type=jnp.float32)
        cov = eps * eye + gram_acc[...] * inv_m - outer

        # Newton-Schulz inverse matrix square root, fully unrolled (n_iter static).
        norm = jnp.sqrt(jnp.sum(cov * cov))                     # Frobenius norm
        y = cov / norm
        z = eye
        for _ in range(n_iter):
            t = 0.5 * (3.0 * eye -
                       jnp.dot(z, y, preferred_element_type=jnp.float32))
            y = jnp.dot(y, t, preferred_element_type=jnp.float32)
            z = jnp.dot(t, z, preferred_element_type=jnp.float32)
        deconv = z / jnp.sqrt(norm)

        mean_ref[...] = mean
        deconv_ref[...] = deconv

        # Whiten the weight and emit it already transposed as (in, out): the
        # main matmul then contracts the minor dims of both tiles (lane-dense
        # MXU feed, unmasked stores). The mean correction of the bias is also
        # folded in here so the hot matmul only needs a ready (1, out) bias.
        corr = jnp.zeros((1, out_f), jnp.float32)
        for j in range(nb):
            wj = w_ref[j].astype(jnp.float32)                   # (out, block)
            w2j = jnp.dot(wj, deconv, preferred_element_type=jnp.float32)
            wtj = w2j.T                                         # (block, out)
            wt_ref[j * block:(j + 1) * block, :] = wtj.astype(wt_ref.dtype)
            corr = corr + jnp.dot(mean, wtj, preferred_element_type=jnp.float32)
        biasc_ref[...] = b_ref[...].astype(jnp.float32) - corr


# ---------------------------------------------------------------------------
# Kernel B: tiled out = x @ w_t + b  (f32 accumulator, bf16 MXU inputs)
# ---------------------------------------------------------------------------
def linear_kernel(x_ref, w_ref, b_ref, o_ref, acc_ref, *, compute_dtype):
    k = pl.program_id(2)

    @pl.when(k == 0)
    def _():
        acc_ref[...] = jnp.zeros_like(acc_ref)

    acc_ref[...] += jnp.dot(x_ref[...].astype(compute_dtype),
                            w_ref[...].astype(compute_dtype),
                            preferred_element_type=jnp.float32)

    @pl.when(k == pl.num_programs(2) - 1)
    def _():
        o_ref[...] = (acc_ref[...] + b_ref[...]).astype(o_ref.dtype)


# ---------------------------------------------------------------------------
# Wrapper
# ---------------------------------------------------------------------------
@functools.partial(jax.jit,
                   static_argnames=("block", "eps", "n_iter", "momentum",
                                    "compute_dtype"))
def delinear_forward(x, weight, bias, running_mean, running_deconv, *,
                     block, eps=1e-5, n_iter=5, momentum=0.1,
                     compute_dtype=jnp.bfloat16):
    n, in_f = x.shape
    out_f = weight.shape[0]
    assert in_f % block == 0, "call resolve_block() first"
    # TODO(synk): support block sizes that are not sublane(8)-aligned (torch's
    # gcd fallback can produce them); the sublane-sliced w_t writes assume 8|block.
    assert block % 8 == 0
    nb = in_f // block
    m_total = n * nb
    x2 = x.reshape(m_total, block)
    # (nb, out, block) weight slabs: the kernel indexes the leading (non-tiled)
    # axis instead of lane-slicing the (out, in) matrix.  One-time layout op.
    w3 = weight.reshape(out_f, nb, block).transpose(1, 0, 2)
    bias2 = bias.reshape(1, out_f)

    # ---- kernel A: streamed cov + isqrt + whitening (one pallas_call) -------
    rows_per_step = min(m_total, 1024)            # 1024 is a multiple of 8
    grid_a = (pl.cdiv(m_total, rows_per_step),)

    mean, deconv, w_t, bias_c = pl.pallas_call(
        functools.partial(preprocess_kernel, eps=eps, n_iter=n_iter,
                          m_total=m_total, rows_per_step=rows_per_step),
        grid=grid_a,
        in_specs=[
            pl.BlockSpec((rows_per_step, block), lambda s: (s, 0)),
            pl.BlockSpec((nb, out_f, block), lambda s: (0, 0, 0)),
            pl.BlockSpec((1, out_f), lambda s: (0, 0)),
        ],
        out_specs=(
            pl.BlockSpec((1, block), lambda s: (0, 0)),
            pl.BlockSpec((block, block), lambda s: (0, 0)),
            pl.BlockSpec((in_f, out_f), lambda s: (0, 0)),
            pl.BlockSpec((1, out_f), lambda s: (0, 0)),
        ),
        out_shape=(
            jax.ShapeDtypeStruct((1, block), jnp.float32),       # mean
            jax.ShapeDtypeStruct((block, block), jnp.float32),   # deconv
            jax.ShapeDtypeStruct((in_f, out_f), compute_dtype),  # whitened w^T
            jax.ShapeDtypeStruct((1, out_f), jnp.float32),       # corrected bias
        ),
        scratch_shapes=[pltpu.VMEM((1, block), jnp.float32),
                        pltpu.VMEM((block, block), jnp.float32)],
        compiler_params=pltpu.CompilerParams(
            dimension_semantics=("arbitrary",),
            vmem_limit_bytes=48 * 1024 * 1024),
    )(x2, w3, bias2)

    # ---- kernel B: tiled final linear ----------------------------------------
    tm = _pick_tile(n, 512, 8)
    tn = _pick_tile(out_f, 512, 128)
    tk = _pick_tile(in_f, 512, 128)
    grid_b = (n // tm, out_f // tn, in_f // tk)

    out = pl.pallas_call(
        functools.partial(linear_kernel, compute_dtype=compute_dtype),
        grid=grid_b,
        in_specs=[
            pl.BlockSpec((tm, tk), lambda i, j, k: (i, k)),
            pl.BlockSpec((tk, tn), lambda i, j, k: (k, j)),
            pl.BlockSpec((1, tn), lambda i, j, k: (0, j)),
        ],
        out_specs=pl.BlockSpec((tm, tn), lambda i, j, k: (i, j)),
        out_shape=jax.ShapeDtypeStruct((n, out_f), x.dtype),
        scratch_shapes=[pltpu.VMEM((tm, tn), jnp.float32)],
        compiler_params=pltpu.CompilerParams(
            dimension_semantics=("parallel", "parallel", "arbitrary"),
            vmem_limit_bytes=48 * 1024 * 1024),
    )(x, w_t, bias_c)

    # running-buffer updates (returned functionally; no in-place state in JAX)
    new_running_mean = (1.0 - momentum) * running_mean + momentum * mean[0]
    new_running_deconv = (1.0 - momentum) * running_deconv + momentum * deconv
    return out, new_running_mean, new_running_deconv


# ---------------------------------------------------------------------------
# Plain-JAX reference (mirrors the torch code, f32 throughout)
# ---------------------------------------------------------------------------
def delinear_reference(x, weight, bias, *, block, eps=1e-5, n_iter=5):
    X = x.reshape(-1, block)
    X_mean = X.mean(0)
    Xc = X - X_mean[None, :]
    Id = jnp.eye(block, dtype=jnp.float32)
    cov = eps * Id + (Xc.T @ Xc) / Xc.shape[0]
    norm_a = jnp.linalg.norm(cov)
    Y = cov / norm_a
    Z = Id
    for _ in range(n_iter):
        T = 0.5 * (3.0 * Id - Z @ Y)
        Y = Y @ T
        Z = T @ Z
    deconv = Z / jnp.sqrt(norm_a)
    w = weight.reshape(-1, block) @ deconv
    b = bias - (w @ X_mean[:, None]).reshape(weight.shape[0], -1).sum(1)
    w = w.reshape(weight.shape)
    return x @ w.T + b


if __name__ == "__main__":
    key = jax.random.PRNGKey(0)
    configs = [
        # (N, in_features, out_features, requested block)
        (8, 64, 32, 32),      # multi-block path (nb = 2), like the torch gcd case
        (16, 128, 64, 512),   # module default block=512 -> clipped to in_features
    ]
    for idx, (N, IN_F, OUT_F, BLK) in enumerate(configs):
        block = resolve_block(IN_F, BLK)
        k_x, k_w, k_b, key = jax.random.split(key, 4)
        bound = 1.0 / math.sqrt(IN_F)   # kaiming_uniform(a=sqrt(5)) bound
        weight = jax.random.uniform(k_w, (OUT_F, IN_F), jnp.float32, -bound, bound)
        bias = jax.random.uniform(k_b, (OUT_F,), jnp.float32, -bound, bound)
        x = jax.random.normal(k_x, (N, IN_F), jnp.float32)
        running_mean = jnp.zeros((block,), jnp.float32)
        running_deconv = jnp.eye(block, dtype=jnp.float32)

        out, new_rm, new_rd = delinear_forward(
            x, weight, bias, running_mean, running_deconv,
            block=block, eps=1e-5, n_iter=5, momentum=0.1)
        jax.block_until_ready((out, new_rm, new_rd))

        ref = delinear_reference(x, weight, bias, block=block, eps=1e-5, n_iter=5)
        assert out.shape == (N, OUT_F)
        err = float(jnp.max(jnp.abs(out - ref)))
        # bf16 MXU inputs with f32 accumulation: ~0.4% relative input rounding.
        assert jnp.allclose(out, ref, rtol=2e-2, atol=2e-2), (
            f"config {idx}: mismatch vs reference, max abs err {err}")
        assert bool(jnp.all(jnp.isfinite(new_rm)))
        assert bool(jnp.all(jnp.isfinite(new_rd)))

    print("KERNEL_OK")
</pallas_src>

<mosaic_0001>
module attributes {stable_mosaic.version = 11 : i64} {
  func.func @preprocess_kernel(%arg0: i32, %arg1: memref<16x32xf32, #tpu.memory_space<vmem>>, %arg2: memref<2x32x32xf32, #tpu.memory_space<vmem>>, %arg3: memref<1x32xf32, #tpu.memory_space<vmem>>, %arg4: memref<1x32xf32, #tpu.memory_space<vmem>>, %arg5: memref<32x32xf32, #tpu.memory_space<vmem>>, %arg6: memref<64x32xbf16, #tpu.memory_space<vmem>>, %arg7: memref<1x32xf32, #tpu.memory_space<vmem>>, %arg8: memref<1x32xf32, #tpu.memory_space<vmem>>, %arg9: memref<32x32xf32, #tpu.memory_space<vmem>>) attributes {dimension_semantics = [#tpu.dimension_semantics<arbitrary>], iteration_bounds = array<i64: 1>, scalar_prefetch = 0 : i64, scratch_operands = 2 : i64, tpu.core_type = #tpu.core_type<tc>, window_params = [{transform_indices = @transform_0, window_bounds = array<i64: 16, 32>}, {pipeline_mode = #tpu.pipeline_mode<synchronous>, transform_indices = @transform_1, window_bounds = array<i64: 2, 32, 32>}, {pipeline_mode = #tpu.pipeline_mode<synchronous>, transform_indices = @transform_2, window_bounds = array<i64: 1, 32>}, {pipeline_mode = #tpu.pipeline_mode<synchronous>, transform_indices = @transform_3, window_bounds = array<i64: 1, 32>}, {pipeline_mode = #tpu.pipeline_mode<synchronous>, transform_indices = @transform_4, window_bounds = array<i64: 32, 32>}, {pipeline_mode = #tpu.pipeline_mode<synchronous>, transform_indices = @transform_5, window_bounds = array<i64: 64, 32>}, {pipeline_mode = #tpu.pipeline_mode<synchronous>, transform_indices = @transform_6, window_bounds = array<i64: 1, 32>}]} {
    %c0_i32 = arith.constant 0 : i32
    %0 = arith.cmpi eq, %arg0, %c0_i32 : i32
    %1 = arith.extui %0 : i1 to i32
    %c0_i32_0 = arith.constant 0 : i32
    %2 = arith.cmpi ne, %1, %c0_i32_0 : i32
    scf.if %2 {
      %cst_15 = arith.constant 0.000000e+00 : f32
      %24 = vector.broadcast %cst_15 : f32 to vector<1x32xf32>
      %c0_16 = arith.constant 0 : index
      %c0_17 = arith.constant 0 : index
      %25 = vector.load %arg8[%c0_16, %c0_17] : memref<1x32xf32, #tpu.memory_space<vmem>>, vector<1x32xf32>
      tpu.vector_store %arg8[%c0_16, %c0_17], %24 {strides = array<i32>} : memref<1x32xf32, #tpu.memory_space<vmem>>, vector<1x32xf32>,
      %cst_18 = arith.constant 0.000000e+00 : f32
      %26 = vector.broadcast %cst_18 : f32 to vector<32x32xf32>
      %c0_19 = arith.constant 0 : index
      %c0_20 = arith.constant 0 : index
      %27 = vector.load %arg9[%c0_19, %c0_20] : memref<32x32xf32, #tpu.memory_space<vmem>>, vector<32x32xf32>
      tpu.vector_store %arg9[%c0_19, %c0_20], %26 {strides = array<i32>} : memref<32x32xf32, #tpu.memory_space<vmem>>, vector<32x32xf32>,
    } else {
    }
    %c0 = arith.constant 0 : index
    %c0_1 = arith.constant 0 : index
    %3 = vector.load %arg1[%c0, %c0_1] : memref<16x32xf32, #tpu.memory_space<vmem>>, vector<16x32xf32>
    %c16_i32 = arith.constant 16 : i32
    %4 = arith.muli %arg0, %c16_i32 : i32
    %5 = tpu.iota {dimensions = array<i32: 0>} : vector<16x32xi32>
    %6 = vector.broadcast %4 : i32 to vector<16x32xi32>
    %7 = arith.addi %6, %5 : vector<16x32xi32>
    %c16_i32_2 = arith.constant 16 : i32
    %8 = vector.broadcast %c16_i32_2 : i32 to vector<16x32xi32>
    %9 = arith.cmpi slt, %7, %8 : vector<16x32xi32>
    %cst = arith.constant 0.000000e+00 : f32
    %10 = vector.broadcast %cst : f32 to vector<16x32xf32>
    %11 = arith.select %9, %3, %10 : vector<16x32xi1>, vector<16x32xf32>
    %c0_3 = arith.constant 0 : index
    %c0_4 = arith.constant 0 : index
    %12 = vector.load %arg8[%c0_3, %c0_4] : memref<1x32xf32, #tpu.memory_space<vmem>>, vector<1x32xf32>
    %cst_5 = arith.constant dense<0.000000e+00> : vector<32xf32>
    %13 = vector.multi_reduction <add>, %11, %cst_5 [0] : vector<16x32xf32> to vector<32xf32>
    %14 = vector.shape_cast %13 : vector<32xf32> to vector<1x32xf32>
    %15 = arith.addf %12, %14 : vector<1x32xf32>
    %c0_6 = arith.constant 0 : index
    %c0_7 = arith.constant 0 : index
    %16 = vector.load %arg8[%c0_6, %c0_7] : memref<1x32xf32, #tpu.memory_space<vmem>>, vector<1x32xf32>
    tpu.vector_store %arg8[%c0_6, %c0_7], %15 {strides = array<i32>} : memref<1x32xf32, #tpu.memory_space<vmem>>, vector<1x32xf32>,
    %c0_8 = arith.constant 0 : index
    %c0_9 = arith.constant 0 : index
    %17 = vector.load %arg9[%c0_8, %c0_9] : memref<32x32xf32, #tpu.memory_space<vmem>>, vector<32x32xf32>
    %cst_10 = arith.constant dense<0.000000e+00> : vector<32x32xf32>
    %18 = tpu.matmul %11, %11, %cst_10 {dimension_numbers = #tpu.dot_dimension_numbers<[0], [0], [1], [1], [0, 1, 1, 1], [], []>} : vector<16x32xf32>, vector<16x32xf32>, vector<32x32xf32> -> vector<32x32xf32>
    %19 = arith.addf %17, %18 : vector<32x32xf32>
    %c0_11 = arith.constant 0 : index
    %c0_12 = arith.constant 0 : index
    %20 = vector.load %arg9[%c0_11, %c0_12] : memref<32x32xf32, #tpu.memory_space<vmem>>, vector<32x32xf32>
    tpu.vector_store %arg9[%c0_11, %c0_12], %19 {strides = array<i32>} : memref<32x32xf32, #tpu.memory_space<vmem>>, vector<32x32xf32>,
    %c0_i32_13 = arith.constant 0 : i32
    %21 = arith.cmpi eq, %arg0, %c0_i32_13 : i32
    %22 = arith.extui %21 : i1 to i32
    %c0_i32_14 = arith.constant 0 : i32
    %23 = arith.cmpi ne, %22, %c0_i32_14 : i32
    scf.if %23 {
      %c0_15 = arith.constant 0 : index
      %c0_16 = arith.constant 0 : index
      %24 = vector.load %arg8[%c0_15, %c0_16] : memref<1x32xf32, #tpu.memory_space<vmem>>, vector<1x32xf32>
      %cst_17 = arith.constant 6.250000e-02 : f32
      %25 = vector.broadcast %cst_17 : f32 to vector<1x32xf32>
      %26 = arith.mulf %24, %25 : vector<1x32xf32>
      %27 = tpu.iota {dimensions = array<i32: 0>} : vector<32x32xi32>
      %28 = tpu.iota {dimensions = array<i32: 1>} : vector<32x32xi32>
      %29 = arith.cmpi eq, %27, %28 : vector<32x32xi32>
      %30 = arith.extui %29 : vector<32x32xi1> to vector<32x32xi32>
      %31 = arith.sitofp %30 : vector<32x32xi32> to vector<32x32xf32>
      %32 = vector.broadcast %26 : vector<1x32xf32> to vector<32x32xf32>
      %33 = arith.mulf %31, %32 : vector<32x32xf32>
      %34 = vector.shape_cast %26 : vector<1x32xf32> to vector<1x32xf32>
      %35 = vector.broadcast %34 : vector<1x32xf32> to vector<32x32xf32>
      %cst_18 = arith.constant dense<0.000000e+00> : vector<32x32xf32>
      %36 = tpu.matmul %33, %35, %cst_18 {dimension_numbers = #tpu.dot_dimension_numbers<[1], [0], [0], [1], [0, 0, 1, 1], [], []>} : vector<32x32xf32>, vector<32x32xf32>, vector<32x32xf32> -> vector<32x32xf32>
      %cst_19 = arith.constant 9.99999974E-6 : f32
      %37 = vector.broadcast %cst_19 : f32 to vector<32x32xf32>
      %38 = arith.mulf %37, %31 : vector<32x32xf32>
      %c0_20 = arith.constant 0 : index
      %c0_21 = arith.constant 0 : index
      %39 = vector.load %arg9[%c0_20, %c0_21] : memref<32x32xf32, #tpu.memory_space<vmem>>, vector<32x32xf32>
      %cst_22 = arith.constant 6.250000e-02 : f32
      %40 = vector.broadcast %cst_22 : f32 to vector<32x32xf32>
      %41 = arith.mulf %39, %40 : vector<32x32xf32>
      %42 = arith.addf %38, %41 : vector<32x32xf32>
      %43 = arith.subf %42, %36 : vector<32x32xf32>
      %44 = arith.mulf %43, %43 : vector<32x32xf32>
      %45 = vector.shape_cast %44 : vector<32x32xf32> to vector<1x32x32xf32>
      %cst_23 = arith.constant dense<0.000000e+00> : vector<1xf32>
      %46 = vector.multi_reduction <add>, %45, %cst_23 [1, 2] : vector<1x32x32xf32> to vector<1xf32>
      %47 = vector.shape_cast %46 : vector<1xf32> to vector<1x1x1xf32>
      %48 = vector.extract %47[0, 0, 0] : f32 from vector<1x1x1xf32>
      %49 = math.sqrt %48 : f32
      %50 = vector.broadcast %49 : f32 to vector<32x32xf32>
      %51 = arith.divf %43, %50 : vector<32x32xf32>
      %cst_24 = arith.constant 3.000000e+00 : f32
      %52 = vector.broadcast %cst_24 : f32 to vector<32x32xf32>
      %53 = arith.mulf %52, %31 : vector<32x32xf32>
      %cst_25 = arith.constant dense<0.000000e+00> : vector<32x32xf32>
      %54 = tpu.matmul %31, %51, %cst_25 {dimension_numbers = #tpu.dot_dimension_numbers<[1], [0], [0], [1], [0, 0, 1, 1], [], []>} : vector<32x32xf32>, vector<32x32xf32>, vector<32x32xf32> -> vector<32x32xf32>
      %55 = arith.subf %53, %54 : vector<32x32xf32>
      %cst_26 = arith.constant 5.000000e-01 : f32
      %56 = vector.broadcast %cst_26 : f32 to vector<32x32xf32>
      %57 = arith.mulf %56, %55 : vector<32x32xf32>
      %cst_27 = arith.constant dense<0.000000e+00> : vector<32x32xf32>
      %58 = tpu.matmul %51, %57, %cst_27 {dimension_numbers = #tpu.dot_dimension_numbers<[1], [0], [0], [1], [0, 0, 1, 1], [], []>} : vector<32x32xf32>, vector<32x32xf32>, vector<32x32xf32> -> vector<32x32xf32>
      %cst_28 = arith.constant dense<0.000000e+00> : vector<32x32xf32>
      %59 = tpu.matmul %57, %31, %cst_28 {dimension_numbers = #tpu.dot_dimension_numbers<[1], [0], [0], [1], [0, 0, 1, 1], [], []>} : vector<32x32xf32>, vector<32x32xf32>, vector<32x32xf32> -> vector<32x32xf32>
      %cst_29 = arith.constant 3.000000e+00 : f32
      %60 = vector.broadcast %cst_29 : f32 to vector<32x32xf32>
      %61 = arith.mulf %60, %31 : vector<32x32xf32>
      %cst_30 = arith.constant dense<0.000000e+00> : vector<32x32xf32>
      %62 = tpu.matmul %59, %58, %cst_30 {dimension_numbers = #tpu.dot_dimension_numbers<[1], [0], [0], [1], [0, 0, 1, 1], [], []>} : vector<32x32xf32>, vector<32x32xf32>, vector<32x32xf32> -> vector<32x32xf32>
      %63 = arith.subf %61, %62 : vector<32x32xf32>
      %cst_31 = arith.constant 5.000000e-01 : f32
      %64 = vector.broadcast %cst_31 : f32 to vector<32x32xf32>
      %65 = arith.mulf %64, %63 : vector<32x32xf32>
      %cst_32 = arith.constant dense<0.000000e+00> : vector<32x32xf32>
      %66 = tpu.matmul %58, %65, %cst_32 {dimension_numbers = #tpu.dot_dimension_numbers<[1], [0], [0], [1], [0, 0, 1, 1], [], []>} : vector<32x32xf32>, vector<32x32xf32>, vector<32x32xf32> -> vector<32x32xf32>
      %cst_33 = arith.constant dense<0.000000e+00> : vector<32x32xf32>
      %67 = tpu.matmul %65, %59, %cst_33 {dimension_numbers = #tpu.dot_dimension_numbers<[1], [0], [0], [1], [0, 0, 1, 1], [], []>} : vector<32x32xf32>, vector<32x32xf32>, vector<32x32xf32> -> vector<32x32xf32>
      %cst_34 = arith.constant 3.000000e+00 : f32
      %68 = vector.broadcast %cst_34 : f32 to vector<32x32xf32>
      %69 = arith.mulf %68, %31 : vector<32x32xf32>
      %cst_35 = arith.constant dense<0.000000e+00> : vector<32x32xf32>
      %70 = tpu.matmul %67, %66, %cst_35 {dimension_numbers = #tpu.dot_dimension_numbers<[1], [0], [0], [1], [0, 0, 1, 1], [], []>} : vector<32x32xf32>, vector<32x32xf32>, vector<32x32xf32> -> vector<32x32xf32>
      %71 = arith.subf %69, %70 : vector<32x32xf32>
      %cst_36 = arith.constant 5.000000e-01 : f32
      %72 = vector.broadcast %cst_36 : f32 to vector<32x32xf32>
      %73 = arith.mulf %72, %71 : vector<32x32xf32>
      %cst_37 = arith.constant dense<0.000000e+00> : vector<32x32xf32>
      %74 = tpu.matmul %66, %73, %cst_37 {dimension_numbers = #tpu.dot_dimension_numbers<[1], [0], [0], [1], [0, 0, 1, 1], [], []>} : vector<32x32xf32>, vector<32x32xf32>, vector<32x32xf32> -> vector<32x32xf32>
      %cst_38 = arith.constant dense<0.000000e+00> : vector<32x32xf32>
      %75 = tpu.matmul %73, %67, %cst_38 {dimension_numbers = #tpu.dot_dimension_numbers<[1], [0], [0], [1], [0, 0, 1, 1], [], []>} : vector<32x32xf32>, vector<32x32xf32>, vector<32x32xf32> -> vector<32x32xf32>
      %cst_39 = arith.constant 3.000000e+00 : f32
      %76 = vector.broadcast %cst_39 : f32 to vector<32x32xf32>
      %77 = arith.mulf %76, %31 : vector<32x32xf32>
      %cst_40 = arith.constant dense<0.000000e+00> : vector<32x32xf32>
      %78 = tpu.matmul %75, %74, %cst_40 {dimension_numbers = #tpu.dot_dimension_numbers<[1], [0], [0], [1], [0, 0, 1, 1], [], []>} : vector<32x32xf32>, vector<32x32xf32>, vector<32x32xf32> -> vector<32x32xf32>
      %79 = arith.subf %77, %78 : vector<32x32xf32>
      %cst_41 = arith.constant 5.000000e-01 : f32
      %80 = vector.broadcast %cst_41 : f32 to vector<32x32xf32>
      %81 = arith.mulf %80, %79 : vector<32x32xf32>
      %cst_42 = arith.constant dense<0.000000e+00> : vector<32x32xf32>
      %82 = tpu.matmul %74, %81, %cst_42 {dimension_numbers = #tpu.dot_dimension_numbers<[1], [0], [0], [1], [0, 0, 1, 1], [], []>} : vector<32x32xf32>, vector<32x32xf32>, vector<32x32xf32> -> vector<32x32xf32>
      %cst_43 = arith.constant dense<0.000000e+00> : vector<32x32xf32>
      %83 = tpu.matmul %81, %75, %cst_43 {dimension_numbers = #tpu.dot_dimension_numbers<[1], [0], [0], [1], [0, 0, 1, 1], [], []>} : vector<32x32xf32>, vector<32x32xf32>, vector<32x32xf32> -> vector<32x32xf32>
      %cst_44 = arith.constant 3.000000e+00 : f32
      %84 = vector.broadcast %cst_44 : f32 to vector<32x32xf32>
      %85 = arith.mulf %84, %31 : vector<32x32xf32>
      %cst_45 = arith.constant dense<0.000000e+00> : vector<32x32xf32>
      %86 = tpu.matmul %83, %82, %cst_45 {dimension_numbers = #tpu.dot_dimension_numbers<[1], [0], [0], [1], [0, 0, 1, 1], [], []>} : vector<32x32xf32>, vector<32x32xf32>, vector<32x32xf32> -> vector<32x32xf32>
      %87 = arith.subf %85, %86 : vector<32x32xf32>
      %cst_46 = arith.constant 5.000000e-01 : f32
      %88 = vector.broadcast %cst_46 : f32 to vector<32x32xf32>
      %89 = arith.mulf %88, %87 : vector<32x32xf32>
      %cst_47 = arith.constant dense<0.000000e+00> : vector<32x32xf32>
      %90 = tpu.matmul %89, %83, %cst_47 {dimension_numbers = #tpu.dot_dimension_numbers<[1], [0], [0], [1], [0, 0, 1, 1], [], []>} : vector<32x32xf32>, vector<32x32xf32>, vector<32x32xf32> -> vector<32x32xf32>
      %91 = math.sqrt %49 : f32
      %92 = vector.broadcast %91 : f32 to vector<32x32xf32>
      %93 = arith.divf %90, %92 : vector<32x32xf32>
      %c0_48 = arith.constant 0 : index
      %c0_49 = arith.constant 0 : index
      %94 = vector.load %arg4[%c0_48, %c0_49] : memref<1x32xf32, #tpu.memory_space<vmem>>, vector<1x32xf32>
      tpu.vector_store %arg4[%c0_48, %c0_49], %26 {strides = array<i32>} : memref<1x32xf32, #tpu.memory_space<vmem>>, vector<1x32xf32>,
      %c0_50 = arith.constant 0 : index
      %c0_51 = arith.constant 0 : index
      %95 = vector.load %arg5[%c0_50, %c0_51] : memref<32x32xf32, #tpu.memory_space<vmem>>, vector<32x32xf32>
      tpu.vector_store %arg5[%c0_50, %c0_51], %93 {strides = array<i32>} : memref<32x32xf32, #tpu.memory_space<vmem>>, vector<32x32xf32>,
      %cst_52 = arith.constant 0.000000e+00 : f32
      %96 = vector.broadcast %cst_52 : f32 to vector<1x32xf32>
      %c0_53 = arith.constant 0 : index
      %c0_54 = arith.constant 0 : index
      %c0_55 = arith.constant 0 : index
      %97 = vector.load %arg2[%c0_53, %c0_54, %c0_55] : memref<2x32x32xf32, #tpu.memory_space<vmem>>, vector<1x32x32xf32>
      %98 = vector.shape_cast %97 : vector<1x32x32xf32> to vector<32x32xf32>
      %cst_56 = arith.constant dense<0.000000e+00> : vector<32x32xf32>
      %99 = tpu.matmul %98, %93, %cst_56 {dimension_numbers = #tpu.dot_dimension_numbers<[1], [0], [0], [1], [0, 0, 1, 1], [], []>} : vector<32x32xf32>, vector<32x32xf32>, vector<32x32xf32> -> vector<32x32xf32>
      %100 = tpu.transpose %99, [1, 0] : vector<32x32xf32> -> vector<32x32xf32>
      %101 = arith.truncf %100 : vector<32x32xf32> to vector<32x32xbf16>
      %c0_57 = arith.constant 0 : index
      %c0_58 = arith.constant 0 : index
      %102 = vector.load %arg6[%c0_57, %c0_58] : memref<64x32xbf16, #tpu.memory_space<vmem>>, vector<32x32xbf16>
      tpu.vector_store %arg6[%c0_57, %c0_58], %101 {strides = array<i32>} : memref<64x32xbf16, #tpu.memory_space<vmem>>, vector<32x32xbf16>,
      %cst_59 = arith.constant dense<0.000000e+00> : vector<1x32xf32>
      %103 = tpu.matmul %26, %100, %cst_59 {dimension_numbers = #tpu.dot_dimension_numbers<[1], [0], [0], [1], [0, 0, 1, 1], [], []>} : vector<1x32xf32>, vector<32x32xf32>, vector<1x32xf32> -> vector<1x32xf32>
      %104 = arith.addf %96, %103 : vector<1x32xf32>
      %c1 = arith.constant 1 : index
      %c0_60 = arith.constant 0 : index
      %c0_61 = arith.constant 0 : index
      %105 = vector.load %arg2[%c1, %c0_60, %c0_61] : memref<2x32x32xf32, #tpu.memory_space<vmem>>, vector<1x32x32xf32>
      %106 = vector.shape_cast %105 : vector<1x32x32xf32> to vector<32x32xf32>
      %cst_62 = arith.constant dense<0.000000e+00> : vector<32x32xf32>
      %107 = tpu.matmul %106, %93, %cst_62 {dimension_numbers = #tpu.dot_dimension_numbers<[1], [0], [0], [1], [0, 0, 1, 1], [], []>} : vector<32x32xf32>, vector<32x32xf32>, vector<32x32xf32> -> vector<32x32xf32>
      %108 = tpu.transpose %107, [1, 0] : vector<32x32xf32> -> vector<32x32xf32>
      %109 = arith.truncf %108 : vector<32x32xf32> to vector<32x32xbf16>
      %c32 = arith.constant 32 : index
      %c0_63 = arith.constant 0 : index
      %110 = vector.load %arg6[%c32, %c0_63] : memref<64x32xbf16, #tpu.memory_space<vmem>>, vector<32x32xbf16>
      tpu.vector_store %arg6[%c32, %c0_63], %109 {strides = array<i32>} : memref<64x32xbf16, #tpu.memory_space<vmem>>, vector<32x32xbf16>,
      %cst_64 = arith.constant dense<0.000000e+00> : vector<1x32xf32>
      %111 = tpu.matmul %26, %108, %cst_64 {dimension_numbers = #tpu.dot_dimension_numbers<[1], [0], [0], [1], [0, 0, 1, 1], [], []>} : vector<1x32xf32>, vector<32x32xf32>, vector<1x32xf32> -> vector<1x32xf32>
      %112 = arith.addf %104, %111 : vector<1x32xf32>
      %c0_65 = arith.constant 0 : index
      %c0_66 = arith.constant 0 : index
      %113 = vector.load %arg3[%c0_65, %c0_66] : memref<1x32xf32, #tpu.memory_space<vmem>>, vector<1x32xf32>
      %114 = arith.subf %113, %112 : vector<1x32xf32>
      %c0_67 = arith.constant 0 : index
      %c0_68 = arith.constant 0 : index
      %115 = vector.load %arg7[%c0_67, %c0_68] : memref<1x32xf32, #tpu.memory_space<vmem>>, vector<1x32xf32>
      tpu.vector_store %arg7[%c0_67, %c0_68], %114 {strides = array<i32>} : memref<1x32xf32, #tpu.memory_space<vmem>>, vector<1x32xf32>,
    } else {
    }
    return
  }
  func.func @transform_0(%arg0: i32) -> (i32, i32) {
    %c0_i32 = arith.constant 0 : i32
    %c0_i32_0 = arith.constant 0 : i32
    return %arg0, %c0_i32 : i32, i32
  }
  func.func @transform_1(%arg0: i32) -> (i32, i32, i32) {
    %c0_i32 = arith.constant 0 : i32
    %c0_i32_0 = arith.constant 0 : i32
    %c0_i32_1 = arith.constant 0 : i32
    %c0_i32_2 = arith.constant 0 : i32
    return %c0_i32, %c0_i32_0, %c0_i32_1 : i32, i32, i32
  }
  func.func @transform_2(%arg0: i32) -> (i32, i32) {
    %c0_i32 = arith.constant 0 : i32
    %c0_i32_0 = arith.constant 0 : i32
    %c0_i32_1 = arith.constant 0 : i32
    return %c0_i32, %c0_i32_0 : i32, i32
  }
  func.func @transform_3(%arg0: i32) -> (i32, i32) {
    %c0_i32 = arith.constant 0 : i32
    %c0_i32_0 = arith.constant 0 : i32
    %c0_i32_1 = arith.constant 0 : i32
    return %c0_i32, %c0_i32_0 : i32, i32
  }
  func.func @transform_4(%arg0: i32) -> (i32, i32) {
    %c0_i32 = arith.constant 0 : i32
    %c0_i32_0 = arith.constant 0 : i32
    %c0_i32_1 = arith.constant 0 : i32
    return %c0_i32, %c0_i32_0 : i32, i32
  }
  func.func @transform_5(%arg0: i32) -> (i32, i32) {
    %c0_i32 = arith.constant 0 : i32
    %c0_i32_0 = arith.constant 0 : i32
    %c0_i32_1 = arith.constant 0 : i32
    return %c0_i32, %c0_i32_0 : i32, i32
  }
  func.func @transform_6(%arg0: i32) -> (i32, i32) {
    %c0_i32 = arith.constant 0 : i32
    %c0_i32_0 = arith.constant 0 : i32
    %c0_i32_1 = arith.constant 0 : i32
    return %c0_i32, %c0_i32_0 : i32, i32
  }
}

module attributes {stable_mosaic.version = 11 : i64} {
  func.func @linear_kernel(%arg0: i32, %arg1: i32, %arg2: i32, %arg3: memref<8x64xf32, #tpu.memory_space<vmem>>, %arg4: memref<64x32xbf16, #tpu.memory_space<vmem>>, %arg5: memref<1x32xf32, #tpu.memory_space<vmem>>, %arg6: memref<8x32xf32, #tpu.memory_space<vmem>>, %arg7: memref<8x32xf32, #tpu.memory_space<vmem>>) attributes {dimension_semantics = [#tpu.dimension_semantics<parallel>, #tpu.dimension_semantics<parallel>, #tpu.dimension_semantics<arbitrary>], iteration_bounds = array<i64: 1, 1, 1>, scalar_prefetch = 0 : i64, scratch_operands = 1 : i64, tpu.core_type = #tpu.core_type<tc>, window_params = [{transform_indices = @transform_0, window_bounds = array<i64: 8, 64>}, {transform_indices = @transform_1, window_bounds = array<i64: 64, 32>}, {transform_indices = @transform_2, window_bounds = array<i64: 1, 32>}, {transform_indices = @transform_3, window_bounds = array<i64: 8, 32>}]} {
    %c0_i32 = arith.constant 0 : i32
    %0 = arith.cmpi eq, %arg2, %c0_i32 : i32
    %1 = arith.extui %0 : i1 to i32
    %c0_i32_0 = arith.constant 0 : i32
    %2 = arith.cmpi ne, %1, %c0_i32_0 : i32
    scf.if %2 {
      %cst_10 = arith.constant 0.000000e+00 : f32
      %13 = vector.broadcast %cst_10 : f32 to vector<8x32xf32>
      %c0_11 = arith.constant 0 : index
      %c0_12 = arith.constant 0 : index
      %14 = vector.load %arg7[%c0_11, %c0_12] : memref<8x32xf32, #tpu.memory_space<vmem>>, vector<8x32xf32>
      tpu.vector_store %arg7[%c0_11, %c0_12], %13 {strides = array<i32>} : memref<8x32xf32, #tpu.memory_space<vmem>>, vector<8x32xf32>,
    } else {
    }
    %c0 = arith.constant 0 : index
    %c0_1 = arith.constant 0 : index
    %3 = vector.load %arg7[%c0, %c0_1] : memref<8x32xf32, #tpu.memory_space<vmem>>, vector<8x32xf32>
    %c0_2 = arith.constant 0 : index
    %c0_3 = arith.constant 0 : index
    %4 = vector.load %arg3[%c0_2, %c0_3] : memref<8x64xf32, #tpu.memory_space<vmem>>, vector<8x64xf32>
    %5 = arith.truncf %4 : vector<8x64xf32> to vector<8x64xbf16>
    %c0_4 = arith.constant 0 : index
    %c0_5 = arith.constant 0 : index
    %6 = vector.load %arg4[%c0_4, %c0_5] : memref<64x32xbf16, #tpu.memory_space<vmem>>, vector<64x32xbf16>
    %cst = arith.constant dense<0.000000e+00> : vector<8x32xf32>
    %7 = tpu.matmul %5, %6, %cst {dimension_numbers = #tpu.dot_dimension_numbers<[1], [0], [0], [1], [0, 0, 1, 1], [], []>} : vector<8x64xbf16>, vector<64x32xbf16>, vector<8x32xf32> -> vector<8x32xf32>
    %8 = arith.addf %3, %7 : vector<8x32xf32>
    %c0_6 = arith.constant 0 : index
    %c0_7 = arith.constant 0 : index
    %9 = vector.load %arg7[%c0_6, %c0_7] : memref<8x32xf32, #tpu.memory_space<vmem>>, vector<8x32xf32>
    tpu.vector_store %arg7[%c0_6, %c0_7], %8 {strides = array<i32>} : memref<8x32xf32, #tpu.memory_space<vmem>>, vector<8x32xf32>,
    %c0_i32_8 = arith.constant 0 : i32
    %10 = arith.cmpi eq, %arg2, %c0_i32_8 : i32
    %11 = arith.extui %10 : i1 to i32
    %c0_i32_9 = arith.constant 0 : i32
    %12 = arith.cmpi ne, %11, %c0_i32_9 : i32
    scf.if %12 {
      %c0_10 = arith.constant 0 : index
      %c0_11 = arith.constant 0 : index
      %13 = vector.load %arg7[%c0_10, %c0_11] : memref<8x32xf32, #tpu.memory_space<vmem>>, vector<8x32xf32>
      %c0_12 = arith.constant 0 : index
      %c0_13 = arith.constant 0 : index
      %14 = vector.load %arg5[%c0_12, %c0_13] : memref<1x32xf32, #tpu.memory_space<vmem>>, vector<1x32xf32>
      %15 = vector.broadcast %14 : vector<1x32xf32> to vector<8x32xf32>
      %16 = arith.addf %13, %15 : vector<8x32xf32>
      %c0_14 = arith.constant 0 : index
      %c0_15 = arith.constant 0 : index
      %17 = vector.load %arg6[%c0_14, %c0_15] : memref<8x32xf32, #tpu.memory_space<vmem>>, vector<8x32xf32>
      tpu.vector_store %arg6[%c0_14, %c0_15], %16 {strides = array<i32>} : memref<8x32xf32, #tpu.memory_space<vmem>>, vector<8x32xf32>,
    } else {
    }
    return
  }
  func.func @transform_0(%arg0: i32, %arg1: i32, %arg2: i32) -> (i32, i32) {
    %c0_i32 = arith.constant 0 : i32
    return %arg0, %arg2 : i32, i32
  }
  func.func @transform_1(%arg0: i32, %arg1: i32, %arg2: i32) -> (i32, i32) {
    %c0_i32 = arith.constant 0 : i32
    return %arg2, %arg1 : i32, i32
  }
  func.func @transform_2(%arg0: i32, %arg1: i32, %arg2: i32) -> (i32, i32) {
    %c0_i32 = arith.constant 0 : i32
    %c0_i32_0 = arith.constant 0 : i32
    return %c0_i32, %arg1 : i32, i32
  }
  func.func @transform_3(%arg0: i32, %arg1: i32, %arg2: i32) -> (i32, i32) {
    %c0_i32 = arith.constant 0 : i32
    return %arg0, %arg1 : i32, i32
  }
}

</mosaic_0001>

<llo_original>
// kernel: delinear_forward.3
$region0: #{delinear_forward.3}
  #allocation0 [shape = 'u32[]', space=smem, size = 0x4, offset = 0x4, fixed_abs, tag = 'smem constant byte address 0x4 - core index']
  #allocation1 [shape = 'u32[72,128]{1,0:T(1,128)}', space=vmem, size = 0x9000, scoped, tag = 'internal scratch']
  #allocation2 [shape = 'f32[8,32]{1,0:T(8,128)}', space=vmem, size = 0x1000, scoped, tag = 'scratch operand']
  %s0 = inlined_call_operand.vmem [shape: f32[8,64], index: 0, kind: input, shape index: {}]
  %s1 = inlined_call_operand.vmem [shape: bf16[64,32], index: 1, kind: input, shape index: {}]
  %s2 = inlined_call_operand.vmem [shape: f32[1,32], index: 2, kind: input, shape index: {}]
  %s3 = inlined_call_operand.hbm [shape: f32[8,32], index: 3, kind: output, shape index: {}]
  %s4 = sld [smem:[#allocation0]]
  $region30: #{delinear_forward.3} parent=0
    _
  %s6 = ssub.s32 1, %s4
  %s7 = scalar_select 0, %s6, %s4
  $region1: #{delinear_forward.3} parent=0
    #allocation3 [shape = 'u8[4096]{0}', space=vmem, size = 0x1000, scoped, tag = 'output window, operand 0, single buffered']
    #allocation4 [shape = 's32[1]{0}', space=sflag, size = 0x4, scoped, tag = 'scoped memory for delinear_forward.3']
    %8 = vsyncpa [#allocation4], 0
    // Predicated region
    $region2: #{delinear_forward.3} parent=1 // pred_check
      _
    $region3: #{delinear_forward.3} parent=1 // pred_check_branch
      %10 = sbr.rel (0) target = $region5
    $region4: #{delinear_forward.3} parent=1 // pred_region
      _
    $region5: #{delinear_forward.3} parent=1 // pred_fallthru
      _
    // Predicated region
    $region6: #{delinear_forward.3} parent=1 // pred_check
      _
    $region7: #{delinear_forward.3} parent=1 // pred_check_branch
      %12 = sbr.rel (0) target = $region9
    $region8: #{delinear_forward.3} parent=1 // pred_region
      _
    $region9: #{delinear_forward.3} parent=1 // pred_fallthru
      _
    // Predicated region
    $region10: #{delinear_forward.3} parent=1 // pred_check
      _
    $region11: #{delinear_forward.3} parent=1 // pred_check_branch
      %14 = sbr.rel (0) target = $region13
    $region12: #{delinear_forward.3} parent=1 // pred_region
      _
    $region13: #{delinear_forward.3} parent=1 // pred_fallthru
      _
    %p16 = scmp.eq.s32.totalorder 0, 0
    // Predicated region
    $region14: #{delinear_forward.3} parent=1 // pred_check
      %p17 = pneg %p16
    $region15: #{delinear_forward.3} parent=1 // pred_check_branch
      %19 = sbr.rel (%p17) target = $region17
    $region16: #{delinear_forward.3} parent=1 // pred_region
      %vm20 = vcmask 261120
      %21 = vst.msk [vmem:[#allocation2] sm:$0xff] %vm20, 0.0
    $region17: #{delinear_forward.3} parent=1 // pred_fallthru
      _
    %v22 = vld [vmem:[#allocation2] sm:$0xff]
    %v23 = vld [vmem:[%s0] sm:$0xff]
    %v24 = vpack.c.bf16 %v23, %v23
    %v25 = vld [vmem:[%s1] sm:$0xf]
    %v26 = vld [vmem:[%s1 + $0x4] sm:$0xf]
    %v27 = vld [vmem:[%s1 + $0x8] sm:$0xf]
    %v28 = vld [vmem:[%s1 + $0xc] sm:$0xf]
    %v29 = vld [vmem:[%s1 + $0x10] sm:$0xf]
    %v30 = vld [vmem:[%s1 + $0x14] sm:$0xf]
    %v31 = vld [vmem:[%s1 + $0x18] sm:$0xf]
    %v32 = vld [vmem:[%s1 + $0x1c] sm:$0xf]
    %v41 = vunpack.c.l.b16 %v25
    %v42 = vunpack.c.l.b16 %v26
    %v43 = vunpack.c.l.b16 %v27
    %v44 = vunpack.c.l.b16 %v28
    %v45 = vunpack.c.l.b16 %v29
    %v46 = vunpack.c.l.b16 %v30
    %v47 = vunpack.c.l.b16 %v31
    %v48 = vunpack.c.l.b16 %v32
    %v49 = vpack.c.b16 %v42, %v41
    %v50 = vpack.c.b16 %v44, %v43
    %v51 = vpack.c.b16 %v46, %v45
    %v52 = vpack.c.b16 %v48, %v47
    %vm57 = vcmask 523264
    %v59 = vsel %vm57, %v24, 0
    %61 = vmatpush.bf16.msra.mxu0 0
    %62 = vmatpush.bf16.msra.mxu0 0
    %63 = vmatpush.bf16.msra.mxu0 0
    %64 = vmatpush.bf16.msra.mxu0 0
    %65 = vmatpush.bf16.msra.mxu0 %v52
    %66 = vmatpush.bf16.msra.mxu0 %v51
    %67 = vmatpush.bf16.msra.mxu0 %v50
    %68 = vmatpush.bf16.msra.mxu0 %v49
    %69 = vmatmul.bf16.gmra.mxu0 %v59
    %v70 = vpop.f32.mrf.mxu0
    %v71 = vadd.f32 0.0, %v70
    %v72 = vpop.f32.mrf.mxu0
    %73 = vdwg.mxu0
    %v74 = vadd.f32 %v22, %v71
    %vm75 = vcmask 261120
    %76 = vst.msk [vmem:[#allocation2] sm:$0xff] %vm75, %v74
    // Predicated region
    $region18: #{delinear_forward.3} parent=1 // pred_check
      %p77 = pneg %p16
    $region19: #{delinear_forward.3} parent=1 // pred_check_branch
      %79 = sbr.rel (%p77) target = $region21
    $region20: #{delinear_forward.3} parent=1 // pred_region
      %v80 = vld [vmem:[#allocation2] sm:$0xff]
      %v81 = vld [vmem:[%s2] sm:$0x1]
      %v83 = vperm.slane %v81, 0
      %v85 = vadd.f32 %v80, %v83
      %86 = vst.msk [vmem:[#allocation3] sm:$0xff] %vm75, %v85
    $region21: #{delinear_forward.3} parent=1 // pred_fallthru
      _
    // Predicated region
    $region22: #{delinear_forward.3} parent=1 // pred_check
      _
    $region23: #{delinear_forward.3} parent=1 // pred_check_branch
      %88 = sbr.rel (0) target = $region25
    $region24: #{delinear_forward.3} parent=1 // pred_region
      %90 = vsyncadd [#allocation4], 0
      %s92 = sshll.u32 [#allocation3], 4
      %s93 = int_to_ptr.vmem [resolvable:$true] %s92
      %s94 = sshll.u32 %s3, 4
      %s95 = int_to_ptr.hbm [resolvable:$true] %s94
      %97 = dma.vmem_to_hbm [thread:$0]  %s93, 128, %s95, [#allocation4]
    $region25: #{delinear_forward.3} parent=1 // pred_fallthru
      _
    // Predicated region
    $region26: #{delinear_forward.3} parent=1 // pred_check
      _
    $region27: #{delinear_forward.3} parent=1 // pred_check_branch
      %99 = sbr.rel (0) target = $region29
    $region28: #{delinear_forward.3} parent=1 // pred_region
      %101 = dma.done [#allocation4], 128
    $region29: #{delinear_forward.3} parent=1 // pred_fallthru
      _
    %102 = vsyncpa [#allocation4], 1

// kernel: delinear_forward.2
$region0: #{delinear_forward.2}
  #allocation0 [shape = 'u32[]', space=smem, size = 0x4, offset = 0x4, fixed_abs, tag = 'smem constant byte address 0x4 - core index']
  #allocation1 [shape = 'u32[72,128]{1,0:T(1,128)}', space=vmem, size = 0x9000, scoped, tag = 'internal scratch']
  #allocation2 [shape = 'f32[1,32]{1,0:T(1,128)}', space=vmem, size = 0x200, scoped, tag = 'scratch operand']
  #allocation3 [shape = 'f32[32,32]{1,0:T(8,128)}', space=vmem, size = 0x4000, scoped, tag = 'scratch operand']
  %s0 = inlined_call_operand.vmem [shape: f32[16,32], index: 0, kind: input, shape index: {}]
  %s1 = inlined_call_operand.vmem [shape: f32[2,32,32], index: 1, kind: input, shape index: {}]
  %s2 = inlined_call_operand.vmem [shape: f32[1,32], index: 2, kind: input, shape index: {}]
  %s3 = inlined_call_operand.vmem [shape: f32[1,32], index: 3, kind: output, shape index: {0}]
  %s4 = inlined_call_operand.vmem [shape: f32[32,32], index: 4, kind: output, shape index: {1}]
  %s5 = inlined_call_operand.vmem [shape: bf16[64,32], index: 5, kind: output, shape index: {2}]
  %s6 = inlined_call_operand.vmem [shape: f32[1,32], index: 6, kind: output, shape index: {3}]
  %7 = xla_tuple %s3, %s4, %s5, %s6
  %s8 = sld [smem:[#allocation0]]
  $region54: #{delinear_forward.2} parent=0
    _
  %s10 = ssub.s32 1, %s8
  %s11 = scalar_select 0, %s10, %s8
  // Predicated region
  $region2: #{delinear_forward.2} parent=0 // pred_check
    _
  $region3: #{delinear_forward.2} parent=0 // pred_check_branch
    %13 = sbr.rel (0) target = $region5
  $region4: #{delinear_forward.2} parent=0 // pred_region
    _
  $region5: #{delinear_forward.2} parent=0 // pred_fallthru
    _
  // Predicated region
  $region6: #{delinear_forward.2} parent=0 // pred_check
    _
  $region7: #{delinear_forward.2} parent=0 // pred_check_branch
    %15 = sbr.rel (0) target = $region9
  $region8: #{delinear_forward.2} parent=0 // pred_region
    _
  $region9: #{delinear_forward.2} parent=0 // pred_fallthru
    _
  // Predicated region
  $region10: #{delinear_forward.2} parent=0 // pred_check
    _
  $region11: #{delinear_forward.2} parent=0 // pred_check_branch
    %17 = sbr.rel (0) target = $region13
  $region12: #{delinear_forward.2} parent=0 // pred_region
    _
  $region13: #{delinear_forward.2} parent=0 // pred_fallthru
    _
  %p18 = scmp.eq.s32.totalorder 0, 0
  // Predicated region
  $region14: #{delinear_forward.2} parent=0 // pred_check
    %p19 = pneg %p18
  $region15: #{delinear_forward.2} parent=0 // pred_check_branch
    %21 = sbr.rel (%p19) target = $region17
  $region16: #{delinear_forward.2} parent=0 // pred_region
    %vm22 = vcmask 253952
    %23 = vst.msk [vmem:[#allocation2] sm:$0x1] %vm22, 0.0
    %vm24 = vcmask 261120
    %25 = vst.msk [vmem:[#allocation3] sm:$0xff] %vm24, 0.0
    %26 = vst.msk [vmem:[#allocation3 + $0x8] sm:$0xff] %vm24, 0.0
    %27 = vst.msk [vmem:[#allocation3 + $0x10] sm:$0xff] %vm24, 0.0
    %28 = vst.msk [vmem:[#allocation3 + $0x18] sm:$0xff] %vm24, 0.0
  $region17: #{delinear_forward.2} parent=0 // pred_fallthru
    _
  %v29 = vld [vmem:[%s0] sm:$0xff]
  %v30 = vld [vmem:[%s0 + $0x8] sm:$0xff]
  %s31 = smul.u32 0, 16
  %v32 = vlaneseq
  %v33 = vshrl.u32 %v32, 7
  %v34 = vadd.s32 %v33, 8
  %v35 = vstv %s31
  %v36 = vadd.s32 %v35, %v33
  %v37 = vadd.s32 %v35, %v34
  %vm38 = vcmp.lt.s32.totalorder %v36, 16
  %vm39 = vcmp.lt.s32.totalorder %v37, 16
  %v40 = vsel %vm38, %v29, 0.0
  %v41 = vsel %vm39, %v30, 0.0
  %v42 = vld [vmem:[#allocation2] sm:$0x1]
  %vm43 = vcmask 261120
  %v44 = vsel %vm43, %v40, 0.0
  %v45 = vsel %vm43, %v41, 0.0
  %v46 = vadd.f32 %v44, %v45
  %v47 = vrot.slane %v46, 4
  %v48 = vadd.f32 %v46, %v47
  %v49 = vrot.slane %v48, 2
  %v50 = vadd.f32 %v48, %v49
  %v51 = vrot.slane %v50, 1
  %v52 = vadd.f32 %v50, %v51
  %v53 = vadd.f32 %v42, %v52
  %vm54 = vcmask 253952
  %55 = vst.msk [vmem:[#allocation2] sm:$0x1] %vm54, %v53
  %v56 = vld [vmem:[#allocation3] sm:$0xff]
  %v57 = vld [vmem:[#allocation3 + $0x8] sm:$0xff]
  %v58 = vld [vmem:[#allocation3 + $0x10] sm:$0xff]
  %v59 = vld [vmem:[#allocation3 + $0x18] sm:$0xff]
  %60 = vxpose.xlu0.b32.start [1/16] %v40, 128
  %61 = vxpose.xlu0.b32.cont [2/16] %v41, 128
  %62 = vxpose.xlu0.b32.cont [3/16] 0.0, 128
  %63 = vxpose.xlu0.b32.cont [4/16] 0.0, 128
  %64 = vxpose.xlu0.b32.cont [5/16] 0.0, 128
  %65 = vxpose.xlu0.b32.cont [6/16] 0.0, 128
  %66 = vxpose.xlu0.b32.cont [7/16] 0.0, 128
  %67 = vxpose.xlu0.b32.cont [8/16] 0.0, 128
  %68 = vxpose.xlu0.b32.cont [9/16] 0.0, 128
  %69 = vxpose.xlu0.b32.cont [10/16] 0.0, 128
  %70 = vxpose.xlu0.b32.cont [11/16] 0.0, 128
  %71 = vxpose.xlu0.b32.cont [12/16] 0.0, 128
  %72 = vxpose.xlu0.b32.cont [13/16] 0.0, 128
  %73 = vxpose.xlu0.b32.cont [14/16] 0.0, 128
  %74 = vxpose.xlu0.b32.cont [15/16] 0.0, 128
  %75 = vxpose.xlu0.b32.end [16/16] 0.0, 128
  %v76 = vpop.trf.xlu0
  %v77 = vpop.trf.xlu0
  %v78 = vpop.trf.xlu0
  %v79 = vpop.trf.xlu0
  %v80 = vpop.trf.xlu0
  %v81 = vpop.trf.xlu0
  %v82 = vpop.trf.xlu0
  %v83 = vpop.trf.xlu0
  %v84 = vpop.trf.xlu0
  %v85 = vpop.trf.xlu0
  %v86 = vpop.trf.xlu0
  %v87 = vpop.trf.xlu0
  %v88 = vpop.trf.xlu0
  %v89 = vpop.trf.xlu0
  %v90 = vpop.trf.xlu0
  %v91 = vpop.trf.xlu0
  %vm92 = vcmask 130048
  %v94 = vsel %vm92, %v76, 0
  %v97 = vsel %vm92, %v77, 0
  %v100 = vsel %vm92, %v78, 0
  %v103 = vsel %vm92, %v79, 0
  %105 = vmatpush.msra.mxu0 0.0
  %106 = vmatpush.msra.mxu0 0.0
  %107 = vmatpush.msra.mxu0 0.0
  %108 = vmatpush.msra.mxu0 0.0
  %109 = vmatpush.msra.mxu0 0.0
  %110 = vmatpush.msra.mxu0 0.0
  %111 = vmatpush.msra.mxu0 0.0
  %112 = vmatpush.msra.mxu0 0.0
  %113 = vmatpush.msra.mxu0 0.0
  %114 = vmatpush.msra.mxu0 0.0
  %115 = vmatpush.msra.mxu0 0.0
  %116 = vmatpush.msra.mxu0 0.0
  %117 = vmatpush.msra.mxu0 0.0
  %118 = vmatpush.msra.mxu0 0.0
  %119 = vmatpush.msra.mxu0 %v41
  %120 = vmatpush.msra.mxu0 %v40
  %121 = vmatmul.f32.gmra.mxu0 %v94
  %v122 = vpop.f32.mrf.mxu0
  %v123 = vadd.f32 0.0, %v122
  %124 = vmatmul.f32.gmra.mxu0 %v97
  %v125 = vpop.f32.mrf.mxu0
  %v126 = vadd.f32 0.0, %v125
  %127 = vmatmul.f32.gmra.mxu0 %v100
  %v128 = vpop.f32.mrf.mxu0
  %v129 = vadd.f32 0.0, %v128
  %130 = vmatmul.f32.gmra.mxu0 %v103
  %v131 = vpop.f32.mrf.mxu0
  %v132 = vadd.f32 0.0, %v131
  %133 = vdwg.mxu0
  %v134 = vadd.f32 %v56, %v123
  %v135 = vadd.f32 %v57, %v126
  %v136 = vadd.f32 %v58, %v129
  %v137 = vadd.f32 %v59, %v132
  %138 = vst.msk [vmem:[#allocation3] sm:$0xff] %vm43, %v134
  %139 = vst.msk [vmem:[#allocation3 + $0x8] sm:$0xff] %vm43, %v135
  %140 = vst.msk [vmem:[#allocation3 + $0x10] sm:$0xff] %vm43, %v136
  %141 = vst.msk [vmem:[#allocation3 + $0x18] sm:$0xff] %vm43, %v137
  // Predicated region
  $region18: #{delinear_forward.2} parent=0 // pred_check
    %p142 = pneg %p18
  $region19: #{delinear_forward.2} parent=0 // pred_check_branch
    %144 = sbr.rel (%p142) target = $region21
  $region20: #{delinear_forward.2} parent=0 // pred_region
    %v145 = vld [vmem:[#allocation2] sm:$0x1]
    %v146 = vmul.f32 %v145, 0.0625
    %v147 = vadd.s32 %v33, 16
    %v148 = vadd.s32 %v33, 24
    %v149 = vlaneseq
    %v150 = vand.u32 %v149, 127
    %vm151 = vcmp.eq.s32.totalorder %v33, %v150
    %vm152 = vcmp.eq.s32.totalorder %v34, %v150
    %vm153 = vcmp.eq.s32.totalorder %v147, %v150
    %vm154 = vcmp.eq.s32.totalorder %v148, %v150
    %v155 = vsel %vm151, 1, 0
    %v156 = vsel %vm152, 1, 0
    %v157 = vsel %vm153, 1, 0
    %v158 = vsel %vm154, 1, 0
    %v159 = vcvt.s32.f32 %v155
    %v160 = vcvt.s32.f32 %v156
    %v161 = vcvt.s32.f32 %v157
    %v162 = vcvt.s32.f32 %v158
    %v164 = vperm.slane %v146, 0
    %v166 = vmul.f32 %v159, %v164
    %v167 = vmul.f32 %v160, %v164
    %v168 = vmul.f32 %v161, %v164
    %v169 = vmul.f32 %v162, %v164
    %v171 = vsel %vm43, %v166, 0
    %v174 = vsel %vm43, %v167, 0
    %v177 = vsel %vm43, %v168, 0
    %v180 = vsel %vm43, %v169, 0
    %182 = vmatpush.msra.mxu0 0.0
    %183 = vmatpush.msra.mxu0 0.0
    %184 = vmatpush.msra.mxu0 0.0
    %185 = vmatpush.msra.mxu0 0.0
    %186 = vmatpush.msra.mxu0 0.0
    %187 = vmatpush.msra.mxu0 0.0
    %188 = vmatpush.msra.mxu0 0.0
    %189 = vmatpush.msra.mxu0 0.0
    %190 = vmatpush.msra.mxu0 0.0
    %191 = vmatpush.msra.mxu0 0.0
    %192 = vmatpush.msra.mxu0 0.0
    %193 = vmatpush.msra.mxu0 0.0
    %194 = vmatpush.msra.mxu0 %v164
    %195 = vmatpush.msra.mxu0 %v164
    %196 = vmatpush.msra.mxu0 %v164
    %197 = vmatpush.msra.mxu0 %v164
    %198 = vmatmul.f32.gmra.mxu0 %v171
    %v199 = vpop.f32.mrf.mxu0
    %v200 = vadd.f32 0.0, %v199
    %201 = vmatmul.f32.gmra.mxu0 %v174
    %v202 = vpop.f32.mrf.mxu0
    %v203 = vadd.f32 0.0, %v202
    %204 = vmatmul.f32.gmra.mxu0 %v177
    %v205 = vpop.f32.mrf.mxu0
    %v206 = vadd.f32 0.0, %v205
    %207 = vmatmul.f32.gmra.mxu0 %v180
    %v208 = vpop.f32.mrf.mxu0
    %v209 = vadd.f32 0.0, %v208
    %210 = vdwg.mxu0
    %v211 = vmul.f32 %v159, 1e-05
    %v212 = vmul.f32 %v160, 1e-05
    %v213 = vmul.f32 %v161, 1e-05
    %v214 = vmul.f32 %v162, 1e-05
    %v215 = vld [vmem:[#allocation3] sm:$0xff]
    %v216 = vld [vmem:[#allocation3 + $0x8] sm:$0xff]
    %v217 = vld [vmem:[#allocation3 + $0x10] sm:$0xff]
    %v218 = vld [vmem:[#allocation3 + $0x18] sm:$0xff]
    %v219 = vmul.f32 %v215, 0.0625
    %v220 = vmul.f32 %v216, 0.0625
    %v221 = vmul.f32 %v217, 0.0625
    %v222 = vmul.f32 %v218, 0.0625
    %v223 = vadd.f32 %v211, %v219
    %v224 = vadd.f32 %v212, %v220
    %v225 = vadd.f32 %v213, %v221
    %v226 = vadd.f32 %v214, %v222
    %v227 = vsub.f32 %v223, %v200
    %v228 = vsub.f32 %v224, %v203
    %v229 = vsub.f32 %v225, %v206
    %v230 = vsub.f32 %v226, %v209
    %v231 = vmul.f32 %v227, %v227
    %v232 = vmul.f32 %v228, %v228
    %v233 = vmul.f32 %v229, %v229
    %v234 = vmul.f32 %v230, %v230
    %v235 = vsel %vm43, %v231, 0.0
    %v236 = vsel %vm43, %v232, 0.0
    %v237 = vadd.f32 %v235, %v236
    %v238 = vsel %vm43, %v233, 0.0
    %v239 = vadd.f32 %v237, %v238
    %v240 = vsel %vm43, %v234, 0.0
    %v241 = vadd.f32 %v239, %v240
    %242 = vadd.xlane.f32.xlu0 %v241
    %v243 = vpop.xlane.xlu0 %242
    %v244 = vrot.slane %v243, 4
    %v245 = vadd.f32 %v243, %v244
    %v246 = vrot.slane %v245, 2
    %v247 = vadd.f32 %v245, %v246
    %v248 = vrot.slane %v247, 1
    %v249 = vadd.f32 %v247, %v248
    %s250 = vtos %v249
    %v251 = vstv %s250
    %v252 = vrsqrt.pop %v251
    %v253 = vmul.f32 %v252, %v251
    %v254 = vmul.f32 %v253, %v252
    %v255 = vmul.f32 0.5, %v254
    %v256 = vsub.f32 1.5, %v255
    %v257 = vmul.f32 %v252, %v256
    %v258 = vmul.f32 %v251, %v257
    %vm259 = vcmp.eq.f32.partialorder %v251, inf
    %v260 = vsel %vm259, %v251, %v258
    %vm261 = vcmp.eq.f32.partialorder %v251, 0.0
    %v262 = vand.u32 %v251, 2147483648
    %v263 = vsel %vm261, %v262, %v260
    %s264 = vtos %v263
    %v265 = vstv %s264
    %v266 = vrcp.pop %v265
    %v267 = vmul.f32 %v265, %v266
    %v268 = vsub.f32 1.0, %v267
    %v269 = vmul.f32 %v266, %v268
    %v270 = vadd.f32 %v266, %v269
    %vm271 = vweird.f32 %v265
    %vm272 = vweird.f32 %v266
    %vm273 = vmor %vm271, %vm272
    %v274 = vsel %vm273, %v266, %v270
    %v275 = vand.u32 2147483647, %v265
    %vm276 = vcmp.eq.f32.partialorder %v275, 8.507059e+37
    %v277 = vand.u32 %v265, 2147483648
    %v278 = vor.u32 1.1754944e-38, %v277
    %v279 = vsel %vm276, %v278, %v274
    %v280 = vmul.f32 %v227, %v279
    %v281 = vmul.f32 %v228, %v279
    %v282 = vmul.f32 %v229, %v279
    %v283 = vmul.f32 %v230, %v279
    %v284 = vmul.f32 %v159, 3.0
    %v285 = vmul.f32 %v160, 3.0
    %v286 = vmul.f32 %v161, 3.0
    %v287 = vmul.f32 %v162, 3.0
    %v289 = vsel %vm43, %v159, 0
    %v292 = vsel %vm43, %v160, 0
    %v295 = vsel %vm43, %v161, 0
    %v298 = vsel %vm43, %v162, 0
    %300 = vmatpush.msra.mxu0 0.0
    %301 = vmatpush.msra.mxu0 0.0
    %302 = vmatpush.msra.mxu0 0.0
    %303 = vmatpush.msra.mxu0 0.0
    %304 = vmatpush.msra.mxu0 0.0
    %305 = vmatpush.msra.mxu0 0.0
    %306 = vmatpush.msra.mxu0 0.0
    %307 = vmatpush.msra.mxu0 0.0
    %308 = vmatpush.msra.mxu0 0.0
    %309 = vmatpush.msra.mxu0 0.0
    %310 = vmatpush.msra.mxu0 0.0
    %311 = vmatpush.msra.mxu0 0.0
    %312 = vmatpush.msra.mxu0 %v283
    %313 = vmatpush.msra.mxu0 %v282
    %314 = vmatpush.msra.mxu0 %v281
    %315 = vmatpush.msra.mxu0 %v280
    %316 = vmatmul.f32.gmra.mxu0 %v289
    %v317 = vpop.f32.mrf.mxu0
    %v318 = vadd.f32 0.0, %v317
    %319 = vmatmul.f32.gmra.mxu0 %v292
    %v320 = vpop.f32.mrf.mxu0
    %v321 = vadd.f32 0.0, %v320
    %322 = vmatmul.f32.gmra.mxu0 %v295
    %v323 = vpop.f32.mrf.mxu0
    %v324 = vadd.f32 0.0, %v323
    %325 = vmatmul.f32.gmra.mxu0 %v298
    %v326 = vpop.f32.mrf.mxu0
    %v327 = vadd.f32 0.0, %v326
    %328 = vdwg.mxu0
    %v329 = vsub.f32 %v284, %v318
    %v330 = vsub.f32 %v285, %v321
    %v331 = vsub.f32 %v286, %v324
    %v332 = vsub.f32 %v287, %v327
    %v333 = vmul.f32 %v329, 0.5
    %v334 = vmul.f32 %v330, 0.5
    %v335 = vmul.f32 %v331, 0.5
    %v336 = vmul.f32 %v332, 0.5
    %v338 = vsel %vm43, %v280, 0
    %v341 = vsel %vm43, %v281, 0
    %v344 = vsel %vm43, %v282, 0
    %v347 = vsel %vm43, %v283, 0
    %349 = vmatpush.msra.mxu0 0.0
    %350 = vmatpush.msra.mxu0 0.0
    %351 = vmatpush.msra.mxu0 0.0
    %352 = vmatpush.msra.mxu0 0.0
    %353 = vmatpush.msra.mxu0 0.0
    %354 = vmatpush.msra.mxu0 0.0
    %355 = vmatpush.msra.mxu0 0.0
    %356 = vmatpush.msra.mxu0 0.0
    %357 = vmatpush.msra.mxu0 0.0
    %358 = vmatpush.msra.mxu0 0.0
    %359 = vmatpush.msra.mxu0 0.0
    %360 = vmatpush.msra.mxu0 0.0
    %361 = vmatpush.msra.mxu0 %v336
    %362 = vmatpush.msra.mxu0 %v335
    %363 = vmatpush.msra.mxu0 %v334
    %364 = vmatpush.msra.mxu0 %v333
    %365 = vmatmul.f32.gmra.mxu0 %v338
    %v366 = vpop.f32.mrf.mxu0
    %v367 = vadd.f32 0.0, %v366
    %368 = vmatmul.f32.gmra.mxu0 %v341
    %v369 = vpop.f32.mrf.mxu0
    %v370 = vadd.f32 0.0, %v369
    %371 = vmatmul.f32.gmra.mxu0 %v344
    %v372 = vpop.f32.mrf.mxu0
    %v373 = vadd.f32 0.0, %v372
    %374 = vmatmul.f32.gmra.mxu0 %v347
    %v375 = vpop.f32.mrf.mxu0
    %v376 = vadd.f32 0.0, %v375
    %377 = vdwg.mxu0
    %v379 = vsel %vm43, %v333, 0
    %v382 = vsel %vm43, %v334, 0
    %v385 = vsel %vm43, %v335, 0
    %v388 = vsel %vm43, %v336, 0
    %390 = vmatpush.msra.mxu0 0.0
    %391 = vmatpush.msra.mxu0 0.0
    %392 = vmatpush.msra.mxu0 0.0
    %393 = vmatpush.msra.mxu0 0.0
    %394 = vmatpush.msra.mxu0 0.0
    %395 = vmatpush.msra.mxu0 0.0
    %396 = vmatpush.msra.mxu0 0.0
    %397 = vmatpush.msra.mxu0 0.0
    %398 = vmatpush.msra.mxu0 0.0
    %399 = vmatpush.msra.mxu0 0.0
    %400 = vmatpush.msra.mxu0 0.0
    %401 = vmatpush.msra.mxu0 0.0
    %402 = vmatpush.msra.mxu0 %v162
    %403 = vmatpush.msra.mxu0 %v161
    %404 = vmatpush.msra.mxu0 %v160
    %405 = vmatpush.msra.mxu0 %v159
    %406 = vmatmul.f32.gmra.mxu0 %v379
    %v407 = vpop.f32.mrf.mxu0
    %v408 = vadd.f32 0.0, %v407
    %409 = vmatmul.f32.gmra.mxu0 %v382
    %v410 = vpop.f32.mrf.mxu0
    %v411 = vadd.f32 0.0, %v410
    %412 = vmatmul.f32.gmra.mxu0 %v385
    %v413 = vpop.f32.mrf.mxu0
    %v414 = vadd.f32 0.0, %v413
    %415 = vmatmul.f32.gmra.mxu0 %v388
    %v416 = vpop.f32.mrf.mxu0
    %v417 = vadd.f32 0.0, %v416
    %418 = vdwg.mxu0
    %v420 = vsel %vm43, %v408, 0
    %v423 = vsel %vm43, %v411, 0
    %v426 = vsel %vm43, %v414, 0
    %v429 = vsel %vm43, %v417, 0
    %431 = vmatpush.msra.mxu0 0.0
    %432 = vmatpush.msra.mxu0 0.0
    %433 = vmatpush.msra.mxu0 0.0
    %434 = vmatpush.msra.mxu0 0.0
    %435 = vmatpush.msra.mxu0 0.0
    %436 = vmatpush.msra.mxu0 0.0
    %437 = vmatpush.msra.mxu0 0.0
    %438 = vmatpush.msra.mxu0 0.0
    %439 = vmatpush.msra.mxu0 0.0
    %440 = vmatpush.msra.mxu0 0.0
    %441 = vmatpush.msra.mxu0 0.0
    %442 = vmatpush.msra.mxu0 0.0
    %443 = vmatpush.msra.mxu0 %v376
    %444 = vmatpush.msra.mxu0 %v373
    %445 = vmatpush.msra.mxu0 %v370
    %446 = vmatpush.msra.mxu0 %v367
    %447 = vmatmul.f32.gmra.mxu0 %v420
    %v448 = vpop.f32.mrf.mxu0
    %v449 = vadd.f32 0.0, %v448
    %450 = vmatmul.f32.gmra.mxu0 %v423
    %v451 = vpop.f32.mrf.mxu0
    %v452 = vadd.f32 0.0, %v451
    %453 = vmatmul.f32.gmra.mxu0 %v426
    %v454 = vpop.f32.mrf.mxu0
    %v455 = vadd.f32 0.0, %v454
    %456 = vmatmul.f32.gmra.mxu0 %v429
    %v457 = vpop.f32.mrf.mxu0
    %v458 = vadd.f32 0.0, %v457
    %459 = vdwg.mxu0
    %v460 = vsub.f32 %v284, %v449
    %v461 = vsub.f32 %v285, %v452
    %v462 = vsub.f32 %v286, %v455
    %v463 = vsub.f32 %v287, %v458
    %v464 = vmul.f32 %v460, 0.5
    %v465 = vmul.f32 %v461, 0.5
    %v466 = vmul.f32 %v462, 0.5
    %v467 = vmul.f32 %v463, 0.5
    %v469 = vsel %vm43, %v367, 0
    %v472 = vsel %vm43, %v370, 0
    %v475 = vsel %vm43, %v373, 0
    %v478 = vsel %vm43, %v376, 0
    %480 = vmatpush.msra.mxu0 0.0
    %481 = vmatpush.msra.mxu0 0.0
    %482 = vmatpush.msra.mxu0 0.0
    %483 = vmatpush.msra.mxu0 0.0
    %484 = vmatpush.msra.mxu0 0.0
    %485 = vmatpush.msra.mxu0 0.0
    %486 = vmatpush.msra.mxu0 0.0
    %487 = vmatpush.msra.mxu0 0.0
    %488 = vmatpush.msra.mxu0 0.0
    %489 = vmatpush.msra.mxu0 0.0
    %490 = vmatpush.msra.mxu0 0.0
    %491 = vmatpush.msra.mxu0 0.0
    %492 = vmatpush.msra.mxu0 %v467
    %493 = vmatpush.msra.mxu0 %v466
    %494 = vmatpush.msra.mxu0 %v465
    %495 = vmatpush.msra.mxu0 %v464
    %496 = vmatmul.f32.gmra.mxu0 %v469
    %v497 = vpop.f32.mrf.mxu0
    %v498 = vadd.f32 0.0, %v497
    %499 = vmatmul.f32.gmra.mxu0 %v472
    %v500 = vpop.f32.mrf.mxu0
    %v501 = vadd.f32 0.0, %v500
    %502 = vmatmul.f32.gmra.mxu0 %v475
    %v503 = vpop.f32.mrf.mxu0
    %v504 = vadd.f32 0.0, %v503
    %505 = vmatmul.f32.gmra.mxu0 %v478
    %v506 = vpop.f32.mrf.mxu0
    %v507 = vadd.f32 0.0, %v506
    %508 = vdwg.mxu0
    %v510 = vsel %vm43, %v464, 0
    %v513 = vsel %vm43, %v465, 0
    %v516 = vsel %vm43, %v466, 0
    %v519 = vsel %vm43, %v467, 0
    %521 = vmatpush.msra.mxu0 0.0
    %522 = vmatpush.msra.mxu0 0.0
    %523 = vmatpush.msra.mxu0 0.0
    %524 = vmatpush.msra.mxu0 0.0
    %525 = vmatpush.msra.mxu0 0.0
    %526 = vmatpush.msra.mxu0 0.0
    %527 = vmatpush.msra.mxu0 0.0
    %528 = vmatpush.msra.mxu0 0.0
    %529 = vmatpush.msra.mxu0 0.0
    %530 = vmatpush.msra.mxu0 0.0
    %531 = vmatpush.msra.mxu0 0.0
    %532 = vmatpush.msra.mxu0 0.0
    %533 = vmatpush.msra.mxu0 %v417
    %534 = vmatpush.msra.mxu0 %v414
    %535 = vmatpush.msra.mxu0 %v411
    %536 = vmatpush.msra.mxu0 %v408
    %537 = vmatmul.f32.gmra.mxu0 %v510
    %v538 = vpop.f32.mrf.mxu0
    %v539 = vadd.f32 0.0, %v538
    %540 = vmatmul.f32.gmra.mxu0 %v513
    %v541 = vpop.f32.mrf.mxu0
    %v542 = vadd.f32 0.0, %v541
    %543 = vmatmul.f32.gmra.mxu0 %v516
    %v544 = vpop.f32.mrf.mxu0
    %v545 = vadd.f32 0.0, %v544
    %546 = vmatmul.f32.gmra.mxu0 %v519
    %v547 = vpop.f32.mrf.mxu0
    %v548 = vadd.f32 0.0, %v547
    %549 = vdwg.mxu0
    %v551 = vsel %vm43, %v539, 0
    %v554 = vsel %vm43, %v542, 0
    %v557 = vsel %vm43, %v545, 0
    %v560 = vsel %vm43, %v548, 0
    %562 = vmatpush.msra.mxu0 0.0
    %563 = vmatpush.msra.mxu0 0.0
    %564 = vmatpush.msra.mxu0 0.0
    %565 = vmatpush.msra.mxu0 0.0
    %566 = vmatpush.msra.mxu0 0.0
    %567 = vmatpush.msra.mxu0 0.0
    %568 = vmatpush.msra.mxu0 0.0
    %569 = vmatpush.msra.mxu0 0.0
    %570 = vmatpush.msra.mxu0 0.0
    %571 = vmatpush.msra.mxu0 0.0
    %572 = vmatpush.msra.mxu0 0.0
    %573 = vmatpush.msra.mxu0 0.0
    %574 = vmatpush.msra.mxu0 %v507
    %575 = vmatpush.msra.mxu0 %v504
    %576 = vmatpush.msra.mxu0 %v501
    %577 = vmatpush.msra.mxu0 %v498
    %578 = vmatmul.f32.gmra.mxu0 %v551
    %v579 = vpop.f32.mrf.mxu0
    %v580 = vadd.f32 0.0, %v579
    %581 = vmatmul.f32.gmra.mxu0 %v554
    %v582 = vpop.f32.mrf.mxu0
    %v583 = vadd.f32 0.0, %v582
    %584 = vmatmul.f32.gmra.mxu0 %v557
    %v585 = vpop.f32.mrf.mxu0
    %v586 = vadd.f32 0.0, %v585
    %587 = vmatmul.f32.gmra.mxu0 %v560
    %v588 = vpop.f32.mrf.mxu0
    %v589 = vadd.f32 0.0, %v588
    %590 = vdwg.mxu0
    %v591 = vsub.f32 %v284, %v580
    %v592 = vsub.f32 %v285, %v583
    %v593 = vsub.f32 %v286, %v586
    %v594 = vsub.f32 %v287, %v589
    %v595 = vmul.f32 %v591, 0.5
    %v596 = vmul.f32 %v592, 0.5
    %v597 = vmul.f32 %v593, 0.5
    %v598 = vmul.f32 %v594, 0.5
    %v600 = vsel %vm43, %v498, 0
    %v603 = vsel %vm43, %v501, 0
    %v606 = vsel %vm43, %v504, 0
    %v609 = vsel %vm43, %v507, 0
    %611 = vmatpush.msra.mxu0 0.0
    %612 = vmatpush.msra.mxu0 0.0
    %613 = vmatpush.msra.mxu0 0.0
    %614 = vmatpush.msra.mxu0 0.0
    %615 = vmatpush.msra.mxu0 0.0
    %616 = vmatpush.msra.mxu0 0.0
    %617 = vmatpush.msra.mxu0 0.0
    %618 = vmatpush.msra.mxu0 0.0
    %619 = vmatpush.msra.mxu0 0.0
    %620 = vmatpush.msra.mxu0 0.0
    %621 = vmatpush.msra.mxu0 0.0
    %622 = vmatpush.msra.mxu0 0.0
    %623 = vmatpush.msra.mxu0 %v598
    %624 = vmatpush.msra.mxu0 %v597
    %625 = vmatpush.msra.mxu0 %v596
    %626 = vmatpush.msra.mxu0 %v595
    %627 = vmatmul.f32.gmra.mxu0 %v600
    %v628 = vpop.f32.mrf.mxu0
    %v629 = vadd.f32 0.0, %v628
    %630 = vmatmul.f32.gmra.mxu0 %v603
    %v631 = vpop.f32.mrf.mxu0
    %v632 = vadd.f32 0.0, %v631
    %633 = vmatmul.f32.gmra.mxu0 %v606
    %v634 = vpop.f32.mrf.mxu0
    %v635 = vadd.f32 0.0, %v634
    %636 = vmatmul.f32.gmra.mxu0 %v609
    %v637 = vpop.f32.mrf.mxu0
    %v638 = vadd.f32 0.0, %v637
    %639 = vdwg.mxu0
    %v641 = vsel %vm43, %v595, 0
    %v644 = vsel %vm43, %v596, 0
    %v647 = vsel %vm43, %v597, 0
    %v650 = vsel %vm43, %v598, 0
    %652 = vmatpush.msra.mxu0 0.0
    %653 = vmatpush.msra.mxu0 0.0
    %654 = vmatpush.msra.mxu0 0.0
    %655 = vmatpush.msra.mxu0 0.0
    %656 = vmatpush.msra.mxu0 0.0
    %657 = vmatpush.msra.mxu0 0.0
    %658 = vmatpush.msra.mxu0 0.0
    %659 = vmatpush.msra.mxu0 0.0
    %660 = vmatpush.msra.mxu0 0.0
    %661 = vmatpush.msra.mxu0 0.0
    %662 = vmatpush.msra.mxu0 0.0
    %663 = vmatpush.msra.mxu0 0.0
    %664 = vmatpush.msra.mxu0 %v548
    %665 = vmatpush.msra.mxu0 %v545
    %666 = vmatpush.msra.mxu0 %v542
    %667 = vmatpush.msra.mxu0 %v539
    %668 = vmatmul.f32.gmra.mxu0 %v641
    %v669 = vpop.f32.mrf.mxu0
    %v670 = vadd.f32 0.0, %v669
    %671 = vmatmul.f32.gmra.mxu0 %v644
    %v672 = vpop.f32.mrf.mxu0
    %v673 = vadd.f32 0.0, %v672
    %674 = vmatmul.f32.gmra.mxu0 %v647
    %v675 = vpop.f32.mrf.mxu0
    %v676 = vadd.f32 0.0, %v675
    %677 = vmatmul.f32.gmra.mxu0 %v650
    %v678 = vpop.f32.mrf.mxu0
    %v679 = vadd.f32 0.0, %v678
    %680 = vdwg.mxu0
    %v682 = vsel %vm43, %v670, 0
    %v685 = vsel %vm43, %v673, 0
    %v688 = vsel %vm43, %v676, 0
    %v691 = vsel %vm43, %v679, 0
    %693 = vmatpush.msra.mxu0 0.0
    %694 = vmatpush.msra.mxu0 0.0
    %695 = vmatpush.msra.mxu0 0.0
    %696 = vmatpush.msra.mxu0 0.0
    %697 = vmatpush.msra.mxu0 0.0
    %698 = vmatpush.msra.mxu0 0.0
    %699 = vmatpush.msra.mxu0 0.0
    %700 = vmatpush.msra.mxu0 0.0
    %701 = vmatpush.msra.mxu0 0.0
    %702 = vmatpush.msra.mxu0 0.0
    %703 = vmatpush.msra.mxu0 0.0
    %704 = vmatpush.msra.mxu0 0.0
    %705 = vmatpush.msra.mxu0 %v638
    %706 = vmatpush.msra.mxu0 %v635
    %707 = vmatpush.msra.mxu0 %v632
    %708 = vmatpush.msra.mxu0 %v629
    %709 = vmatmul.f32.gmra.mxu0 %v682
    %v710 = vpop.f32.mrf.mxu0
    %v711 = vadd.f32 0.0, %v710
    %712 = vmatmul.f32.gmra.mxu0 %v685
    %v713 = vpop.f32.mrf.mxu0
    %v714 = vadd.f32 0.0, %v713
    %715 = vmatmul.f32.gmra.mxu0 %v688
    %v716 = vpop.f32.mrf.mxu0
    %v717 = vadd.f32 0.0, %v716
    %718 = vmatmul.f32.gmra.mxu0 %v691
    %v719 = vpop.f32.mrf.mxu0
    %v720 = vadd.f32 0.0, %v719
    %721 = vdwg.mxu0
    %v722 = vsub.f32 %v284, %v711
    %v723 = vsub.f32 %v285, %v714
    %v724 = vsub.f32 %v286, %v717
    %v725 = vsub.f32 %v287, %v720
    %v726 = vmul.f32 %v722, 0.5
    %v727 = vmul.f32 %v723, 0.5
    %v728 = vmul.f32 %v724, 0.5
    %v729 = vmul.f32 %v725, 0.5
    %v731 = vsel %vm43, %v629, 0
    %v734 = vsel %vm43, %v632, 0
    %v737 = vsel %vm43, %v635, 0
    %v740 = vsel %vm43, %v638, 0
    %742 = vmatpush.msra.mxu0 0.0
    %743 = vmatpush.msra.mxu0 0.0
    %744 = vmatpush.msra.mxu0 0.0
    %745 = vmatpush.msra.mxu0 0.0
    %746 = vmatpush.msra.mxu0 0.0
    %747 = vmatpush.msra.mxu0 0.0
    %748 = vmatpush.msra.mxu0 0.0
    %749 = vmatpush.msra.mxu0 0.0
    %750 = vmatpush.msra.mxu0 0.0
    %751 = vmatpush.msra.mxu0 0.0
    %752 = vmatpush.msra.mxu0 0.0
    %753 = vmatpush.msra.mxu0 0.0
    %754 = vmatpush.msra.mxu0 %v729
    %755 = vmatpush.msra.mxu0 %v728
    %756 = vmatpush.msra.mxu0 %v727
    %757 = vmatpush.msra.mxu0 %v726
    %758 = vmatmul.f32.gmra.mxu0 %v731
    %v759 = vpop.f32.mrf.mxu0
    %v760 = vadd.f32 0.0, %v759
    %761 = vmatmul.f32.gmra.mxu0 %v734
    %v762 = vpop.f32.mrf.mxu0
    %v763 = vadd.f32 0.0, %v762
    %764 = vmatmul.f32.gmra.mxu0 %v737
    %v765 = vpop.f32.mrf.mxu0
    %v766 = vadd.f32 0.0, %v765
    %767 = vmatmul.f32.gmra.mxu0 %v740
    %v768 = vpop.f32.mrf.mxu0
    %v769 = vadd.f32 0.0, %v768
    %770 = vdwg.mxu0
    %v772 = vsel %vm43, %v726, 0
    %v775 = vsel %vm43, %v727, 0
    %v778 = vsel %vm43, %v728, 0
    %v781 = vsel %vm43, %v729, 0
    %783 = vmatpush.msra.mxu0 0.0
    %784 = vmatpush.msra.mxu0 0.0
    %785 = vmatpush.msra.mxu0 0.0
    %786 = vmatpush.msra.mxu0 0.0
    %787 = vmatpush.msra.mxu0 0.0
    %788 = vmatpush.msra.mxu0 0.0
    %789 = vmatpush.msra.mxu0 0.0
    %790 = vmatpush.msra.mxu0 0.0
    %791 = vmatpush.msra.mxu0 0.0
    %792 = vmatpush.msra.mxu0 0.0
    %793 = vmatpush.msra.mxu0 0.0
    %794 = vmatpush.msra.mxu0 0.0
    %795 = vmatpush.msra.mxu0 %v679
    %796 = vmatpush.msra.mxu0 %v676
    %797 = vmatpush.msra.mxu0 %v673
    %798 = vmatpush.msra.mxu0 %v670
    %799 = vmatmul.f32.gmra.mxu0 %v772
    %v800 = vpop.f32.mrf.mxu0
    %v801 = vadd.f32 0.0, %v800
    %802 = vmatmul.f32.gmra.mxu0 %v775
    %v803 = vpop.f32.mrf.mxu0
    %v804 = vadd.f32 0.0, %v803
    %805 = vmatmul.f32.gmra.mxu0 %v778
    %v806 = vpop.f32.mrf.mxu0
    %v807 = vadd.f32 0.0, %v806
    %808 = vmatmul.f32.gmra.mxu0 %v781
    %v809 = vpop.f32.mrf.mxu0
    %v810 = vadd.f32 0.0, %v809
    %811 = vdwg.mxu0
    %v813 = vsel %vm43, %v801, 0
    %v816 = vsel %vm43, %v804, 0
    %v819 = vsel %vm43, %v807, 0
    %v822 = vsel %vm43, %v810, 0
    %824 = vmatpush.msra.mxu0 0.0
    %825 = vmatpush.msra.mxu0 0.0
    %826 = vmatpush.msra.mxu0 0.0
    %827 = vmatpush.msra.mxu0 0.0
    %828 = vmatpush.msra.mxu0 0.0
    %829 = vmatpush.msra.mxu0 0.0
    %830 = vmatpush.msra.mxu0 0.0
    %831 = vmatpush.msra.mxu0 0.0
    %832 = vmatpush.msra.mxu0 0.0
    %833 = vmatpush.msra.mxu0 0.0
    %834 = vmatpush.msra.mxu0 0.0
    %835 = vmatpush.msra.mxu0 0.0
    %836 = vmatpush.msra.mxu0 %v769
    %837 = vmatpush.msra.mxu0 %v766
    %838 = vmatpush.msra.mxu0 %v763
    %839 = vmatpush.msra.mxu0 %v760
    %840 = vmatmul.f32.gmra.mxu0 %v813
    %v841 = vpop.f32.mrf.mxu0
    %v842 = vadd.f32 0.0, %v841
    %843 = vmatmul.f32.gmra.mxu0 %v816
    %v844 = vpop.f32.mrf.mxu0
    %v845 = vadd.f32 0.0, %v844
    %846 = vmatmul.f32.gmra.mxu0 %v819
    %v847 = vpop.f32.mrf.mxu0
    %v848 = vadd.f32 0.0, %v847
    %849 = vmatmul.f32.gmra.mxu0 %v822
    %v850 = vpop.f32.mrf.mxu0
    %v851 = vadd.f32 0.0, %v850
    %852 = vdwg.mxu0
    %v853 = vsub.f32 %v284, %v842
    %v854 = vsub.f32 %v285, %v845
    %v855 = vsub.f32 %v286, %v848
    %v856 = vsub.f32 %v287, %v851
    %v857 = vmul.f32 %v853, 0.5
    %v858 = vmul.f32 %v854, 0.5
    %v859 = vmul.f32 %v855, 0.5
    %v860 = vmul.f32 %v856, 0.5
    %v862 = vsel %vm43, %v857, 0
    %v865 = vsel %vm43, %v858, 0
    %v868 = vsel %vm43, %v859, 0
    %v871 = vsel %vm43, %v860, 0
    %873 = vmatpush.msra.mxu0 0.0
    %874 = vmatpush.msra.mxu0 0.0
    %875 = vmatpush.msra.mxu0 0.0
    %876 = vmatpush.msra.mxu0 0.0
    %877 = vmatpush.msra.mxu0 0.0
    %878 = vmatpush.msra.mxu0 0.0
    %879 = vmatpush.msra.mxu0 0.0
    %880 = vmatpush.msra.mxu0 0.0
    %881 = vmatpush.msra.mxu0 0.0
    %882 = vmatpush.msra.mxu0 0.0
    %883 = vmatpush.msra.mxu0 0.0
    %884 = vmatpush.msra.mxu0 0.0
    %885 = vmatpush.msra.mxu0 %v810
    %886 = vmatpush.msra.mxu0 %v807
    %887 = vmatpush.msra.mxu0 %v804
    %888 = vmatpush.msra.mxu0 %v801
    %889 = vmatmul.f32.gmra.mxu0 %v862
    %v890 = vpop.f32.mrf.mxu0
    %v891 = vadd.f32 0.0, %v890
    %892 = vmatmul.f32.gmra.mxu0 %v865
    %v893 = vpop.f32.mrf.mxu0
    %v894 = vadd.f32 0.0, %v893
    %895 = vmatmul.f32.gmra.mxu0 %v868
    %v896 = vpop.f32.mrf.mxu0
    %v897 = vadd.f32 0.0, %v896
    %898 = vmatmul.f32.gmra.mxu0 %v871
    %v899 = vpop.f32.mrf.mxu0
    %v900 = vadd.f32 0.0, %v899
    %901 = vdwg.mxu0
    %v902 = vstv %s264
    %v903 = vrsqrt.pop %v902
    %v904 = vmul.f32 %v903, %v902
    %v905 = vmul.f32 %v904, %v903
    %v906 = vmul.f32 0.5, %v905
    %v907 = vsub.f32 1.5, %v906
    %v908 = vmul.f32 %v903, %v907
    %v909 = vmul.f32 %v902, %v908
    %vm910 = vcmp.eq.f32.partialorder %v902, inf
    %v911 = vsel %vm910, %v902, %v909
    %vm912 = vcmp.eq.f32.partialorder %v902, 0.0
    %v913 = vand.u32 %v902, 2147483648
    %v914 = vsel %vm912, %v913, %v911
    %s915 = vtos %v914
    %v916 = vstv %s915
    %v917 = vrcp.pop %v916
    %v918 = vmul.f32 %v916, %v917
    %v919 = vsub.f32 1.0, %v918
    %v920 = vmul.f32 %v917, %v919
    %v921 = vadd.f32 %v917, %v920
    %vm922 = vweird.f32 %v916
    %vm923 = vweird.f32 %v917
    %vm924 = vmor %vm922, %vm923
    %v925 = vsel %vm924, %v917, %v921
    %v926 = vand.u32 2147483647, %v916
    %vm927 = vcmp.eq.f32.partialorder %v926, 8.507059e+37
    %v928 = vand.u32 %v916, 2147483648
    %v929 = vor.u32 1.1754944e-38, %v928
    %v930 = vsel %vm927, %v929, %v925
    %v931 = vmul.f32 %v891, %v930
    %v932 = vmul.f32 %v894, %v930
    %v933 = vmul.f32 %v897, %v930
    %v934 = vmul.f32 %v900, %v930
    %935 = vst.msk [vmem:[%s3] sm:$0x1] %vm54, %v146
    %936 = vst.msk [vmem:[%s4] sm:$0xff] %vm43, %v931
    %937 = vst.msk [vmem:[%s4 + $0x8] sm:$0xff] %vm43, %v932
    %938 = vst.msk [vmem:[%s4 + $0x10] sm:$0xff] %vm43, %v933
    %939 = vst.msk [vmem:[%s4 + $0x18] sm:$0xff] %vm43, %v934
    %v940 = vld [vmem:[%s1] sm:$0xff]
    %v941 = vld [vmem:[%s1 + $0x8] sm:$0xff]
    %v942 = vld [vmem:[%s1 + $0x10] sm:$0xff]
    %v943 = vld [vmem:[%s1 + $0x18] sm:$0xff]
    %v945 = vsel %vm43, %v940, 0
    %v948 = vsel %vm43, %v941, 0
    %v951 = vsel %vm43, %v942, 0
    %v954 = vsel %vm43, %v943, 0
    %956 = vmatpush.msra.mxu0 0.0
    %957 = vmatpush.msra.mxu0 0.0
    %958 = vmatpush.msra.mxu0 0.0
    %959 = vmatpush.msra.mxu0 0.0
    %960 = vmatpush.msra.mxu0 0.0
    %961 = vmatpush.msra.mxu0 0.0
    %962 = vmatpush.msra.mxu0 0.0
    %963 = vmatpush.msra.mxu0 0.0
    %964 = vmatpush.msra.mxu0 0.0
    %965 = vmatpush.msra.mxu0 0.0
    %966 = vmatpush.msra.mxu0 0.0
    %967 = vmatpush.msra.mxu0 0.0
    %968 = vmatpush.msra.mxu0 %v934
    %969 = vmatpush.msra.mxu0 %v933
    %970 = vmatpush.msra.mxu0 %v932
    %971 = vmatpush.msra.mxu0 %v931
    %972 = vmatmul.f32.gmra.mxu0 %v945
    %v973 = vpop.f32.mrf.mxu0
    %v974 = vadd.f32 0.0, %v973
    %975 = vmatmul.f32.gmra.mxu0 %v948
    %v976 = vpop.f32.mrf.mxu0
    %v977 = vadd.f32 0.0, %v976
    %978 = vmatmul.f32.gmra.mxu0 %v951
    %v979 = vpop.f32.mrf.mxu0
    %v980 = vadd.f32 0.0, %v979
    %981 = vmatmul.f32.gmra.mxu0 %v954
    %v982 = vpop.f32.mrf.mxu0
    %v983 = vadd.f32 0.0, %v982
    %984 = vdwg.mxu0
    %985 = vxpose.xlu0.b32.start [1/16] %v974, 128
    %986 = vxpose.xlu0.b32.cont [2/16] %v977, 128
    %987 = vxpose.xlu0.b32.cont [3/16] %v980, 128
    %988 = vxpose.xlu0.b32.cont [4/16] %v983, 128
    %989 = vxpose.xlu0.b32.cont [5/16] 0.0, 128
    %990 = vxpose.xlu0.b32.cont [6/16] 0.0, 128
    %991 = vxpose.xlu0.b32.cont [7/16] 0.0, 128
    %992 = vxpose.xlu0.b32.cont [8/16] 0.0, 128
    %993 = vxpose.xlu0.b32.cont [9/16] 0.0, 128
    %994 = vxpose.xlu0.b32.cont [10/16] 0.0, 128
    %995 = vxpose.xlu0.b32.cont [11/16] 0.0, 128
    %996 = vxpose.xlu0.b32.cont [12/16] 0.0, 128
    %997 = vxpose.xlu0.b32.cont [13/16] 0.0, 128
    %998 = vxpose.xlu0.b32.cont [14/16] 0.0, 128
    %999 = vxpose.xlu0.b32.cont [15/16] 0.0, 128
    %1000 = vxpose.xlu0.b32.end [16/16] 0.0, 128
    %v1001 = vpop.trf.xlu0
    %v1002 = vpop.trf.xlu0
    %v1003 = vpop.trf.xlu0
    %v1004 = vpop.trf.xlu0
    %v1005 = vpop.trf.xlu0
    %v1006 = vpop.trf.xlu0
    %v1007 = vpop.trf.xlu0
    %v1008 = vpop.trf.xlu0
    %v1009 = vpop.trf.xlu0
    %v1010 = vpop.trf.xlu0
    %v1011 = vpop.trf.xlu0
    %v1012 = vpop.trf.xlu0
    %v1013 = vpop.trf.xlu0
    %v1014 = vpop.trf.xlu0
    %v1015 = vpop.trf.xlu0
    %v1016 = vpop.trf.xlu0
    %v1017 = vpack.c.bf16 %v1001, %v1001
    %v1018 = vpack.c.bf16 %v1002, %v1002
    %v1019 = vpack.c.bf16 %v1003, %v1003
    %v1020 = vpack.c.bf16 %v1004, %v1004
    %vm1021 = vcmask 257024
    %1022 = vst.msk [vmem:[%s5] sm:$0xf] %vm1021, %v1017
    %1023 = vst.msk [vmem:[%s5 + $0x4] sm:$0xf] %vm1021, %v1018
    %1024 = vst.msk [vmem:[%s5 + $0x8] sm:$0xf] %vm1021, %v1019
    %1025 = vst.msk [vmem:[%s5 + $0xc] sm:$0xf] %vm1021, %v1020
    %s1026 = scalar_lea.vmem %s1, 32
    %v1027 = vld [vmem:[%s1026] sm:$0xff]
    %v1028 = vld [vmem:[%s1026 + $0x8] sm:$0xff]
    %v1029 = vld [vmem:[%s1026 + $0x10] sm:$0xff]
    %v1030 = vld [vmem:[%s1026 + $0x18] sm:$0xff]
    %v1032 = vsel %vm43, %v1027, 0
    %v1035 = vsel %vm43, %v1028, 0
    %v1038 = vsel %vm43, %v1029, 0
    %v1041 = vsel %vm43, %v1030, 0
    %1043 = vmatpush.msra.mxu0 0.0
    %1044 = vmatpush.msra.mxu0 0.0
    %1045 = vmatpush.msra.mxu0 0.0
    %1046 = vmatpush.msra.mxu0 0.0
    %1047 = vmatpush.msra.mxu0 0.0
    %1048 = vmatpush.msra.mxu0 0.0
    %1049 = vmatpush.msra.mxu0 0.0
    %1050 = vmatpush.msra.mxu0 0.0
    %1051 = vmatpush.msra.mxu0 0.0
    %1052 = vmatpush.msra.mxu0 0.0
    %1053 = vmatpush.msra.mxu0 0.0
    %1054 = vmatpush.msra.mxu0 0.0
    %1055 = vmatpush.msra.mxu0 %v934
    %1056 = vmatpush.msra.mxu0 %v933
    %1057 = vmatpush.msra.mxu0 %v932
    %1058 = vmatpush.msra.mxu0 %v931
    %1059 = vmatmul.f32.gmra.mxu0 %v1032
    %v1060 = vpop.f32.mrf.mxu0
    %v1061 = vadd.f32 0.0, %v1060
    %1062 = vmatmul.f32.gmra.mxu0 %v1035
    %v1063 = vpop.f32.mrf.mxu0
    %v1064 = vadd.f32 0.0, %v1063
    %1065 = vmatmul.f32.gmra.mxu0 %v1038
    %v1066 = vpop.f32.mrf.mxu0
    %v1067 = vadd.f32 0.0, %v1066
    %1068 = vmatmul.f32.gmra.mxu0 %v1041
    %v1069 = vpop.f32.mrf.mxu0
    %v1070 = vadd.f32 0.0, %v1069
    %1071 = vdwg.mxu0
    %1072 = vxpose.xlu0.b32.start [1/16] %v1061, 128
    %1073 = vxpose.xlu0.b32.cont [2/16] %v1064, 128
    %1074 = vxpose.xlu0.b32.cont [3/16] %v1067, 128
    %1075 = vxpose.xlu0.b32.cont [4/16] %v1070, 128
    %1076 = vxpose.xlu0.b32.cont [5/16] 0.0, 128
    %1077 = vxpose.xlu0.b32.cont [6/16] 0.0, 128
    %1078 = vxpose.xlu0.b32.cont [7/16] 0.0, 128
    %1079 = vxpose.xlu0.b32.cont [8/16] 0.0, 128
    %1080 = vxpose.xlu0.b32.cont [9/16] 0.0, 128
    %1081 = vxpose.xlu0.b32.cont [10/16] 0.0, 128
    %1082 = vxpose.xlu0.b32.cont [11/16] 0.0, 128
    %1083 = vxpose.xlu0.b32.cont [12/16] 0.0, 128
    %1084 = vxpose.xlu0.b32.cont [13/16] 0.0, 128
    %1085 = vxpose.xlu0.b32.cont [14/16] 0.0, 128
    %1086 = vxpose.xlu0.b32.cont [15/16] 0.0, 128
    %1087 = vxpose.xlu0.b32.end [16/16] 0.0, 128
    %v1088 = vpop.trf.xlu0
    %v1089 = vpop.trf.xlu0
    %v1090 = vpop.trf.xlu0
    %v1091 = vpop.trf.xlu0
    %v1092 = vpop.trf.xlu0
    %v1093 = vpop.trf.xlu0
    %v1094 = vpop.trf.xlu0
    %v1095 = vpop.trf.xlu0
    %v1096 = vpop.trf.xlu0
    %v1097 = vpop.trf.xlu0
    %v1098 = vpop.trf.xlu0
    %v1099 = vpop.trf.xlu0
    %v1100 = vpop.trf.xlu0
    %v1101 = vpop.trf.xlu0
    %v1102 = vpop.trf.xlu0
    %v1103 = vpop.trf.xlu0
    %v1104 = vpack.c.bf16 %v1088, %v1088
    %v1105 = vpack.c.bf16 %v1089, %v1089
    %v1106 = vpack.c.bf16 %v1090, %v1090
    %v1107 = vpack.c.bf16 %v1091, %v1091
    %1108 = vst.msk [vmem:[%s5 + $0x10] sm:$0xf] %vm1021, %v1104
    %1109 = vst.msk [vmem:[%s5 + $0x14] sm:$0xf] %vm1021, %v1105
    %1110 = vst.msk [vmem:[%s5 + $0x18] sm:$0xf] %vm1021, %v1106
    %1111 = vst.msk [vmem:[%s5 + $0x1c] sm:$0xf] %vm1021, %v1107
    %v1112 = vsel %vm43, %v146, 0
    %1114 = vmatpush.msra.mxu0 0.0
    %1115 = vmatpush.msra.mxu0 0.0
    %1116 = vmatpush.msra.mxu0 0.0
    %1117 = vmatpush.msra.mxu0 0.0
    %1118 = vmatpush.msra.mxu0 0.0
    %1119 = vmatpush.msra.mxu0 0.0
    %1120 = vmatpush.msra.mxu0 0.0
    %1121 = vmatpush.msra.mxu0 0.0
    %1122 = vmatpush.msra.mxu0 0.0
    %1123 = vmatpush.msra.mxu0 0.0
    %1124 = vmatpush.msra.mxu0 0.0
    %1125 = vmatpush.msra.mxu0 0.0
    %1126 = vmatpush.msra.mxu0 %v1091
    %1127 = vmatpush.msra.mxu0 %v1090
    %1128 = vmatpush.msra.mxu0 %v1089
    %1129 = vmatpush.msra.mxu0 %v1088
    %1130 = vmatmul.f32.gmra.mxu0 %v1112
    %v1131 = vpop.f32.mrf.mxu0
    %v1132 = vadd.f32 0.0, %v1131
    %1133 = vdwg.mxu0
    %1134 = vmatpush.msra.mxu0 0.0
    %1135 = vmatpush.msra.mxu0 0.0
    %1136 = vmatpush.msra.mxu0 0.0
    %1137 = vmatpush.msra.mxu0 0.0
    %1138 = vmatpush.msra.mxu0 0.0
    %1139 = vmatpush.msra.mxu0 0.0
    %1140 = vmatpush.msra.mxu0 0.0
    %1141 = vmatpush.msra.mxu0 0.0
    %1142 = vmatpush.msra.mxu0 0.0
    %1143 = vmatpush.msra.mxu0 0.0
    %1144 = vmatpush.msra.mxu0 0.0
    %1145 = vmatpush.msra.mxu0 0.0
    %1146 = vmatpush.msra.mxu0 %v1004
    %1147 = vmatpush.msra.mxu0 %v1003
    %1148 = vmatpush.msra.mxu0 %v1002
    %1149 = vmatpush.msra.mxu0 %v1001
    %1150 = vmatmul.f32.gmra.mxu0 %v1112
    %v1151 = vpop.f32.mrf.mxu0
    %v1152 = vadd.f32 %v1132, %v1151
    %1153 = vdwg.mxu0
    %v1154 = vld [vmem:[%s2] sm:$0x1]
    %v1155 = vsub.f32 %v1154, %v1152
    %1156 = vst.msk [vmem:[%s6] sm:$0x1] %vm54, %v1155
  $region21: #{delinear_forward.2} parent=0 // pred_fallthru
    _
  // Predicated region
  $region22: #{delinear_forward.2} parent=0 // pred_check
    _
  $region23: #{delinear_forward.2} parent=0 // pred_check_branch
    %1158 = sbr.rel (0) target = $region25
  $region24: #{delinear_forward.2} parent=0 // pred_region
    _
  $region25: #{delinear_forward.2} parent=0 // pred_fallthru
    _
  // Predicated region
  $region26: #{delinear_forward.2} parent=0 // pred_check
    _
  $region27: #{delinear_forward.2} parent=0 // pred_check_branch
    %1160 = sbr.rel (0) target = $region29
  $region28: #{delinear_forward.2} parent=0 // pred_region
    _
  $region29: #{delinear_forward.2} parent=0 // pred_fallthru
    _
  // Predicated region
  $region30: #{delinear_forward.2} parent=0 // pred_check
    _
  $region31: #{delinear_forward.2} parent=0 // pred_check_branch
    %1162 = sbr.rel (0) target = $region33
  $region32: #{delinear_forward.2} parent=0 // pred_region
    _
  $region33: #{delinear_forward.2} parent=0 // pred_fallthru
    _
  // Predicated region
  $region34: #{delinear_forward.2} parent=0 // pred_check
    _
  $region35: #{delinear_forward.2} parent=0 // pred_check_branch
    %1164 = sbr.rel (0) target = $region37
  $region36: #{delinear_forward.2} parent=0 // pred_region
    _
  $region37: #{delinear_forward.2} parent=0 // pred_fallthru
    _
  // Predicated region
  $region38: #{delinear_forward.2} parent=0 // pred_check
    _
  $region39: #{delinear_forward.2} parent=0 // pred_check_branch
    %1166 = sbr.rel (0) target = $region41
  $region40: #{delinear_forward.2} parent=0 // pred_region
    _
  $region41: #{delinear_forward.2} parent=0 // pred_fallthru
    _
  // Predicated region
  $region42: #{delinear_forward.2} parent=0 // pred_check
    _
  $region43: #{delinear_forward.2} parent=0 // pred_check_branch
    %1168 = sbr.rel (0) target = $region45
  $region44: #{delinear_forward.2} parent=0 // pred_region
    _
  $region45: #{delinear_forward.2} parent=0 // pred_fallthru
    _
  // Predicated region
  $region46: #{delinear_forward.2} parent=0 // pred_check
    _
  $region47: #{delinear_forward.2} parent=0 // pred_check_branch
    %1170 = sbr.rel (0) target = $region49
  $region48: #{delinear_forward.2} parent=0 // pred_region
    _
  $region49: #{delinear_forward.2} parent=0 // pred_fallthru
    _
  // Predicated region
  $region50: #{delinear_forward.2} parent=0 // pred_check
    _
  $region51: #{delinear_forward.2} parent=0 // pred_check_branch
    %1172 = sbr.rel (0) target = $region53
  $region52: #{delinear_forward.2} parent=0 // pred_region
    _
  $region53: #{delinear_forward.2} parent=0 // pred_fallthru
    _

</llo_original>
